<compile_context>
chip_gen: v5e
topology: v5e:2x2
jax: 0.10.0
libtpu: 0.0.40
codegen_flags: <defaults>
</compile_context>

<pallas_src>
import math

import jax
import jax.numpy as jnp
from jax.experimental import pallas as pl
from jax.experimental.pallas import tpu as pltpu

# ----------------------------- model config --------------------------------
VOCAB = 64          # synthetic vocab (real model: 30522)
TYPE_VOCAB = 2
MAX_POS = 16
H = 128             # hidden size  (bert_uncased_L-2_H-128_A-2)
NH = 2              # attention heads
HD = H // NH        # head dim = 64
INTER = 512         # FFN intermediate = 4*H
LAYERS = 2
B = 2               # batch
S = 8               # sequence length
R = NH * B * S      # 32 rows in the (head, batch, seq) attention layout
LN_EPS = 1e-12
NEG_INF = -1e9


def _layernorm(x, g, b, eps=LN_EPS):
    mu = jnp.mean(x, axis=-1, keepdims=True)
    var = jnp.mean(jnp.square(x - mu), axis=-1, keepdims=True)
    return (x - mu) * jax.lax.rsqrt(var + eps) * g + b


# ------------------------------ kernel ---------------------------------------
def fused_bert_kernel(tgt_ref,                      # SMEM (B,) int32 (prefetch)
                      x_emb_ref,                    # (B*S, H) f32 embedding sum
                      bias_ref,                     # (R, R)  f32 combined attn bias
                      embln_ref,                    # (2, H)  f32 [gamma; beta]
                      wqkv_ref,                     # (1, 3, 2H, HD) bf16 head-stacked Wq/Wk/Wv
                      qkvb_ref,                     # (1, 3, R, HD)  f32 row-broadcast biases
                      wo_ref,                       # (1, NH, HD, H) bf16 per-head W_O
                      vecs_ref,                     # (1, 6, H) f32 [bo,ln1g,ln1b,b2,ln2g,ln2b]
                      w1_ref,                       # (1, H, INTER) bf16
                      b1_ref,                       # (1, 1, INTER) f32
                      w2_ref,                       # (1, INTER, H) bf16
                      o_ref,                        # (B, H) f32
                      x_sc):                        # VMEM (B*S, H) f32 residual carry
    l = pl.program_id(0)
    scale = 1.0 / math.sqrt(HD)

    # ---- embedding LayerNorm (first grid step only) --------------------------
    @pl.when(l == 0)
    def _():
        embln = embln_ref[...]
        x_sc[...] = _layernorm(x_emb_ref[...].astype(jnp.float32),
                               embln[0:1, :], embln[1:2, :])

    x = x_sc[...]                                   # (16, 128) f32
    vecs = vecs_ref[0]                              # (6, 128) f32

    # ---- QKV via head-block-diagonal slab (no 64-lane slices) ----------------
    xb = x.astype(jnp.bfloat16)
    zeros = jnp.zeros_like(xb)
    x2 = jnp.concatenate(
        [jnp.concatenate([xb, zeros], axis=1),
         jnp.concatenate([zeros, xb], axis=1)], axis=0)           # (32, 256) bf16

    q = jnp.dot(x2, wqkv_ref[0, 0], preferred_element_type=jnp.float32) + qkvb_ref[0, 0]
    k = jnp.dot(x2, wqkv_ref[0, 1], preferred_element_type=jnp.float32) + qkvb_ref[0, 1]
    v = jnp.dot(x2, wqkv_ref[0, 2], preferred_element_type=jnp.float32) + qkvb_ref[0, 2]
    # rows ordered (head, batch, seq); columns = head dim (64)

    # ---- attention, batched over ALL (head, batch) pairs in 2 matmuls --------
    s = jax.lax.dot_general(q.astype(jnp.bfloat16), k.astype(jnp.bfloat16),
                            (((1,), (1,)), ((), ())),
                            preferred_element_type=jnp.float32)   # (32, 32)
    s = s * scale + bias_ref[...]          # block-diag + key-padding bias
    s = s - jnp.max(s, axis=-1, keepdims=True)
    p = jnp.exp(s)
    p = p * pl.reciprocal(jnp.sum(p, axis=-1, keepdims=True), approx=True)
    ctx = jnp.dot(p.astype(jnp.bfloat16), v.astype(jnp.bfloat16),
                  preferred_element_type=jnp.float32)             # (32, 64)

    # ---- output projection: per-head row blocks vs pre-split W_O rows --------
    attn = (jnp.dot(ctx[0:B * S].astype(jnp.bfloat16), wo_ref[0, 0],
                    preferred_element_type=jnp.float32)
            + jnp.dot(ctx[B * S:R].astype(jnp.bfloat16), wo_ref[0, 1],
                      preferred_element_type=jnp.float32)
            + vecs[0:1, :])                                       # + bo -> (16, 128)
    x1 = _layernorm(x + attn, vecs[1:2, :], vecs[2:3, :])

    # ---- FFN ------------------------------------------------------------------
    hid = jnp.dot(x1.astype(jnp.bfloat16), w1_ref[0],
                  preferred_element_type=jnp.float32) + b1_ref[0]
    # TODO(synk): HF BERT uses exact erf-GELU; tanh approximation in-kernel.
    hid = jax.nn.gelu(hid, approximate=True)
    ffn = jnp.dot(hid.astype(jnp.bfloat16), w2_ref[0],
                  preferred_element_type=jnp.float32) + vecs[3:4, :]
    x_new = _layernorm(x1 + ffn, vecs[4:5, :], vecs[5:6, :])
    x_sc[...] = x_new

    # ---- gather hidden state of the target token per batch row (last layer) --
    @pl.when(l == LAYERS - 1)
    def _():
        rid = jax.lax.broadcasted_iota(jnp.int32, (B * S, H), 0)   # hoisted once
        rows = []
        for b in range(B):
            t = tgt_ref[b] + b * S
            rows.append(jnp.sum(jnp.where(rid == t, x_new, 0.0),
                                axis=0, keepdims=True))
        o_ref[...] = jnp.concatenate(rows, axis=0).astype(o_ref.dtype)


# ------------------------------ wrapper --------------------------------------
def bert_encoder_pallas(packed, x_emb_flat, attn_bias, target_idxs):
    const2 = lambda l, tgt: (0, 0)
    layer3 = lambda l, tgt: (l, 0, 0)
    layer4 = lambda l, tgt: (l, 0, 0, 0)

    in_specs = [
        pl.BlockSpec((B * S, H), const2),            # embedding sum (flattened)
        pl.BlockSpec((R, R), const2),                # combined attention bias
        pl.BlockSpec((2, H), const2),                # emb LN gamma/beta
        pl.BlockSpec((1, 3, 2 * H, HD), layer4),     # head-stacked Wq/Wk/Wv
        pl.BlockSpec((1, 3, R, HD), layer4),         # row-broadcast q/k/v biases
        pl.BlockSpec((1, NH, HD, H), layer4),        # per-head W_O
        pl.BlockSpec((1, 6, H), layer3),             # packed small vectors
        pl.BlockSpec((1, H, INTER), layer3),         # W1
        pl.BlockSpec((1, 1, INTER), layer3),         # b1
        pl.BlockSpec((1, INTER, H), layer3),         # W2
    ]
    return pl.pallas_call(
        fused_bert_kernel,
        out_shape=jax.ShapeDtypeStruct((B, H), jnp.float32),
        grid_spec=pltpu.PrefetchScalarGridSpec(
            num_scalar_prefetch=1,
            grid=(LAYERS,),
            in_specs=in_specs,
            out_specs=pl.BlockSpec((B, H), const2),
            scratch_shapes=[pltpu.VMEM((B * S, H), jnp.float32)],
        ),
        compiler_params=pltpu.CompilerParams(
            dimension_semantics=("arbitrary",)),
    )(target_idxs.astype(jnp.int32),
      x_emb_flat, attn_bias, packed["emb_ln"],
      packed["wqkv"], packed["qkv_bias"], packed["wo_h"], packed["vecs"],
      packed["w1"], packed["b1"], packed["w2"])


# ------------------------- parameters & packing ------------------------------
def init_params(key):
    keys = jax.random.split(key, 15)
    nrm = lambda k, shape: 0.02 * jax.random.normal(k, shape, jnp.float32)
    return {
        "word_emb": nrm(keys[0], (VOCAB, H)),
        "pos_emb": nrm(keys[1], (MAX_POS, H)),
        "type_emb": nrm(keys[2], (TYPE_VOCAB, H)),
        "emb_ln_g": jnp.ones((H,), jnp.float32),
        "emb_ln_b": jnp.zeros((H,), jnp.float32),
        # Linear layers use the x @ W + b convention, stacked over layers.
        "wq": nrm(keys[3], (LAYERS, H, H)), "bq": nrm(keys[9], (LAYERS, H)),
        "wk": nrm(keys[4], (LAYERS, H, H)), "bk": nrm(keys[10], (LAYERS, H)),
        "wv": nrm(keys[5], (LAYERS, H, H)), "bv": nrm(keys[11], (LAYERS, H)),
        "wo": nrm(keys[6], (LAYERS, H, H)), "bo": nrm(keys[12], (LAYERS, H)),
        "ln1_g": jnp.ones((LAYERS, H), jnp.float32),
        "ln1_b": jnp.zeros((LAYERS, H), jnp.float32),
        "w1": nrm(keys[7], (LAYERS, H, INTER)), "b1": nrm(keys[13], (LAYERS, INTER)),
        "w2": nrm(keys[8], (LAYERS, INTER, H)), "b2": nrm(keys[14], (LAYERS, H)),
        "ln2_g": jnp.ones((LAYERS, H), jnp.float32),
        "ln2_b": jnp.zeros((LAYERS, H), jnp.float32),
    }


def pack_params(p):
    """Repack canonical per-layer weights into the fused-kernel layout."""
    def split_heads(w):   # (L, H, H) -> (L, NH*H, HD); row block h holds W[:, h*HD:(h+1)*HD]
        return (w.reshape(LAYERS, H, NH, HD)
                 .transpose(0, 2, 1, 3)
                 .reshape(LAYERS, NH * H, HD))

    def head_rows(b):     # (L, H) -> (L, R, HD); per-head bias broadcast over B*S rows
        return jnp.broadcast_to(b.reshape(LAYERS, NH, 1, HD),
                                (LAYERS, NH, B * S, HD)).reshape(LAYERS, R, HD)

    return {
        "word_emb": p["word_emb"], "pos_emb": p["pos_emb"], "type_emb": p["type_emb"],
        "emb_ln": jnp.stack([p["emb_ln_g"], p["emb_ln_b"]], axis=0),          # (2, H)
        "wqkv": jnp.stack([split_heads(p["wq"]), split_heads(p["wk"]),
                           split_heads(p["wv"])], axis=1).astype(jnp.bfloat16),
        "qkv_bias": jnp.stack([head_rows(p["bq"]), head_rows(p["bk"]),
                               head_rows(p["bv"])], axis=1),                  # (L,3,R,HD)
        "wo_h": p["wo"].reshape(LAYERS, NH, HD, H).astype(jnp.bfloat16),
        "vecs": jnp.stack([p["bo"], p["ln1_g"], p["ln1_b"],
                           p["b2"], p["ln2_g"], p["ln2_b"]], axis=1),         # (L,6,H)
        "w1": p["w1"].astype(jnp.bfloat16),
        "b1": p["b1"].reshape(LAYERS, 1, INTER),
        "w2": p["w2"].astype(jnp.bfloat16),
    }


def build_attn_bias(input_masks):
    """(R, R) additive bias: block-diagonal over (head, batch) + key padding."""
    r = jnp.arange(R)
    h_idx = r // (B * S)
    b_idx = (r % (B * S)) // S
    s_idx = r % S
    same_block = (h_idx[:, None] == h_idx[None, :]) & (b_idx[:, None] == b_idx[None, :])
    key_valid = input_masks[b_idx, s_idx] > 0
    return jnp.where(same_block & key_valid[None, :], 0.0, NEG_INF).astype(jnp.float32)


# --------------------------- full forward pass -------------------------------
@jax.jit
def bert_narrative_graph_forward(packed, input_ids, input_masks,
                                 token_type_ids, target_idxs):
    # Embedding-table lookups are plain-JAX glue; everything downstream
    # (embedding LN + 2 transformer layers + target gather) is one fused kernel.
    x = (packed["word_emb"][input_ids]
         + packed["pos_emb"][jnp.arange(S)][None, :, :]
         + packed["type_emb"][token_type_ids])                     # (B, S, H)
    attn_bias = build_attn_bias(input_masks)
    return bert_encoder_pallas(packed, x.reshape(B * S, H), attn_bias, target_idxs)

# NOTE: merge_node_representations is a separate post-processing method (not
# part of forward) and is intentionally not implemented here.


# ---------------------------- pure-JAX reference -----------------------------
def bert_reference(p, input_ids, input_masks, token_type_ids, target_idxs):
    """Standard (per-batch, per-head) BERT encoder mirroring the kernel's
    bf16-at-the-MXU precision choices."""
    def mm(a, w):
        return jnp.dot(a.astype(jnp.bfloat16), w.astype(jnp.bfloat16),
                       preferred_element_type=jnp.float32)

    x = (p["word_emb"][input_ids] + p["pos_emb"][jnp.arange(S)][None]
         + p["type_emb"][token_type_ids])
    x = _layernorm(x, p["emb_ln_g"], p["emb_ln_b"])
    key_bias = (1.0 - input_masks.astype(jnp.float32))[:, None, None, :] * NEG_INF
    for l in range(LAYERS):
        q = (mm(x, p["wq"][l]) + p["bq"][l]).reshape(B, S, NH, HD).transpose(0, 2, 1, 3)
        k = (mm(x, p["wk"][l]) + p["bk"][l]).reshape(B, S, NH, HD).transpose(0, 2, 1, 3)
        v = (mm(x, p["wv"][l]) + p["bv"][l]).reshape(B, S, NH, HD).transpose(0, 2, 1, 3)
        s = jnp.einsum("bhqd,bhkd->bhqk", q.astype(jnp.bfloat16), k.astype(jnp.bfloat16),
                       preferred_element_type=jnp.float32) / math.sqrt(HD) + key_bias
        w = jax.nn.softmax(s, axis=-1)
        ctx = jnp.einsum("bhqk,bhkd->bhqd", w.astype(jnp.bfloat16), v.astype(jnp.bfloat16),
                         preferred_element_type=jnp.float32)
        ctx = ctx.transpose(0, 2, 1, 3).reshape(B, S, H)
        attn = mm(ctx, p["wo"][l]) + p["bo"][l]
        x1 = _layernorm(x + attn, p["ln1_g"][l], p["ln1_b"][l])
        hid = jax.nn.gelu(mm(x1, p["w1"][l]) + p["b1"][l], approximate=True)
        x = _layernorm(x1 + mm(hid, p["w2"][l]) + p["b2"][l],
                       p["ln2_g"][l], p["ln2_b"][l])
    return x[jnp.arange(B), target_idxs]            # (B, H)


# --------------------------------- main --------------------------------------
if __name__ == "__main__":
    key = jax.random.PRNGKey(0)
    kp, kid = jax.random.split(key, 2)

    params = init_params(kp)
    packed = pack_params(params)

    input_ids = jax.random.randint(kid, (B, S), 0, VOCAB, dtype=jnp.int32)
    input_masks = jnp.array([[1, 1, 1, 1, 1, 1, 1, 1],
                             [1, 1, 1, 1, 1, 0, 0, 0]], dtype=jnp.int32)
    token_type_ids = jnp.zeros((B, S), dtype=jnp.int32)
    target_idxs = jnp.array([1, 3], dtype=jnp.int32)

    emb = bert_narrative_graph_forward(packed, input_ids, input_masks,
                                       token_type_ids, target_idxs)
    emb = jax.block_until_ready(emb)

    assert emb.shape == (B, H), emb.shape
    assert bool(jnp.all(jnp.isfinite(emb)))

    ref = bert_reference(params, input_ids, input_masks, token_type_ids, target_idxs)
    err = float(jnp.max(jnp.abs(emb - ref)))
    assert err < 5e-2, f"max abs error vs JAX reference: {err}"

    print("KERNEL_OK")
</pallas_src>

<mosaic_0001>
module attributes {stable_mosaic.version = 11 : i64} {
  func.func @fused_bert_kernel(%arg0: i32, %arg1: memref<2xi32, #tpu.memory_space<smem>>, %arg2: memref<16x128xf32, #tpu.memory_space<vmem>>, %arg3: memref<32x32xf32, #tpu.memory_space<vmem>>, %arg4: memref<2x128xf32, #tpu.memory_space<vmem>>, %arg5: memref<1x3x256x64xbf16, #tpu.memory_space<vmem>>, %arg6: memref<1x3x32x64xf32, #tpu.memory_space<vmem>>, %arg7: memref<1x2x64x128xbf16, #tpu.memory_space<vmem>>, %arg8: memref<1x6x128xf32, #tpu.memory_space<vmem>>, %arg9: memref<1x128x512xbf16, #tpu.memory_space<vmem>>, %arg10: memref<1x1x512xf32, #tpu.memory_space<vmem>>, %arg11: memref<1x512x128xbf16, #tpu.memory_space<vmem>>, %arg12: memref<2x128xf32, #tpu.memory_space<vmem>>, %arg13: memref<16x128xf32, #tpu.memory_space<vmem>>) attributes {dimension_semantics = [#tpu.dimension_semantics<arbitrary>], iteration_bounds = array<i64: 2>, scalar_prefetch = 1 : i64, scratch_operands = 1 : i64, tpu.core_type = #tpu.core_type<tc>, window_params = [{pipeline_mode = #tpu.pipeline_mode<synchronous>, transform_indices = @transform_0, window_bounds = array<i64: 16, 128>}, {pipeline_mode = #tpu.pipeline_mode<synchronous>, transform_indices = @transform_1, window_bounds = array<i64: 32, 32>}, {pipeline_mode = #tpu.pipeline_mode<synchronous>, transform_indices = @transform_2, window_bounds = array<i64: 2, 128>}, {transform_indices = @transform_3, window_bounds = array<i64: 1, 3, 256, 64>}, {transform_indices = @transform_4, window_bounds = array<i64: 1, 3, 32, 64>}, {transform_indices = @transform_5, window_bounds = array<i64: 1, 2, 64, 128>}, {transform_indices = @transform_6, window_bounds = array<i64: 1, 6, 128>}, {transform_indices = @transform_7, window_bounds = array<i64: 1, 128, 512>}, {transform_indices = @transform_8, window_bounds = array<i64: 1, 1, 512>}, {transform_indices = @transform_9, window_bounds = array<i64: 1, 512, 128>}, {pipeline_mode = #tpu.pipeline_mode<synchronous>, transform_indices = @transform_10, window_bounds = array<i64: 2, 128>}]} {
    %c0_i32 = arith.constant 0 : i32
    %0 = arith.cmpi eq, %arg0, %c0_i32 : i32
    %1 = arith.extui %0 : i1 to i32
    %c0_i32_0 = arith.constant 0 : i32
    %2 = arith.cmpi ne, %1, %c0_i32_0 : i32
    scf.if %2 {
      %c0_75 = arith.constant 0 : index
      %c0_76 = arith.constant 0 : index
      %145 = vector.load %arg4[%c0_75, %c0_76] : memref<2x128xf32, #tpu.memory_space<vmem>>, vector<2x128xf32>
      %c0_77 = arith.constant 0 : index
      %c0_78 = arith.constant 0 : index
      %146 = vector.load %arg2[%c0_77, %c0_78] : memref<16x128xf32, #tpu.memory_space<vmem>>, vector<16x128xf32>
      %147 = vector.extract_strided_slice %145 {offsets = [0, 0], sizes = [1, 128], strides = [1, 1]} : vector<2x128xf32> to vector<1x128xf32>
      %148 = vector.extract_strided_slice %145 {offsets = [1, 0], sizes = [1, 128], strides = [1, 1]} : vector<2x128xf32> to vector<1x128xf32>
      %cst_79 = arith.constant dense<0.000000e+00> : vector<16xf32>
      %149 = vector.multi_reduction <add>, %146, %cst_79 [1] : vector<16x128xf32> to vector<16xf32>
      %150 = vector.shape_cast %149 : vector<16xf32> to vector<16x1xf32>
      %cst_80 = arith.constant 1.280000e+02 : f32
      %151 = vector.broadcast %cst_80 : f32 to vector<16x1xf32>
      %152 = arith.divf %150, %151 : vector<16x1xf32>
      %153 = vector.broadcast %152 : vector<16x1xf32> to vector<16x128xf32>
      %154 = arith.subf %146, %153 : vector<16x128xf32>
      %155 = arith.mulf %154, %154 : vector<16x128xf32>
      %cst_81 = arith.constant dense<0.000000e+00> : vector<16xf32>
      %156 = vector.multi_reduction <add>, %155, %cst_81 [1] : vector<16x128xf32> to vector<16xf32>
      %157 = vector.shape_cast %156 : vector<16xf32> to vector<16x1xf32>
      %cst_82 = arith.constant 1.280000e+02 : f32
      %158 = vector.broadcast %cst_82 : f32 to vector<16x1xf32>
      %159 = arith.divf %157, %158 : vector<16x1xf32>
      %160 = vector.broadcast %152 : vector<16x1xf32> to vector<16x128xf32>
      %161 = arith.subf %146, %160 : vector<16x128xf32>
      %cst_83 = arith.constant 9.99999996E-13 : f32
      %162 = vector.broadcast %cst_83 : f32 to vector<16x1xf32>
      %163 = arith.addf %159, %162 : vector<16x1xf32>
      %164 = math.rsqrt %163 : vector<16x1xf32>
      %165 = vector.broadcast %164 : vector<16x1xf32> to vector<16x128xf32>
      %166 = arith.mulf %161, %165 : vector<16x128xf32>
      %167 = vector.broadcast %147 : vector<1x128xf32> to vector<16x128xf32>
      %168 = arith.mulf %166, %167 : vector<16x128xf32>
      %169 = vector.broadcast %148 : vector<1x128xf32> to vector<16x128xf32>
      %170 = arith.addf %168, %169 : vector<16x128xf32>
      %c0_84 = arith.constant 0 : index
      %c0_85 = arith.constant 0 : index
      %171 = vector.load %arg13[%c0_84, %c0_85] : memref<16x128xf32, #tpu.memory_space<vmem>>, vector<16x128xf32>
      tpu.vector_store %arg13[%c0_84, %c0_85], %170 {strides = array<i32>} : memref<16x128xf32, #tpu.memory_space<vmem>>, vector<16x128xf32>,
    } else {
    }
    %c0 = arith.constant 0 : index
    %c0_1 = arith.constant 0 : index
    %3 = vector.load %arg13[%c0, %c0_1] : memref<16x128xf32, #tpu.memory_space<vmem>>, vector<16x128xf32>
    %c0_2 = arith.constant 0 : index
    %c0_3 = arith.constant 0 : index
    %c0_4 = arith.constant 0 : index
    %4 = vector.load %arg8[%c0_2, %c0_3, %c0_4] : memref<1x6x128xf32, #tpu.memory_space<vmem>>, vector<1x6x128xf32>
    %5 = vector.shape_cast %4 : vector<1x6x128xf32> to vector<6x128xf32>
    %6 = arith.truncf %3 : vector<16x128xf32> to vector<16x128xbf16>
    %cst = arith.constant 0.000000e+00 : bf16
    %7 = vector.broadcast %cst : bf16 to vector<16x128xbf16>
    %8 = tpu.concatenate %6, %7 in 1 : vector<16x128xbf16>, vector<16x128xbf16> -> vector<16x256xbf16>
    %9 = tpu.concatenate %7, %6 in 1 : vector<16x128xbf16>, vector<16x128xbf16> -> vector<16x256xbf16>
    %10 = tpu.concatenate %8, %9 in 0 : vector<16x256xbf16>, vector<16x256xbf16> -> vector<32x256xbf16>
    %c0_5 = arith.constant 0 : index
    %c0_6 = arith.constant 0 : index
    %c0_7 = arith.constant 0 : index
    %c0_8 = arith.constant 0 : index
    %11 = vector.load %arg5[%c0_5, %c0_6, %c0_7, %c0_8] : memref<1x3x256x64xbf16, #tpu.memory_space<vmem>>, vector<1x1x256x64xbf16>
    %12 = vector.shape_cast %11 : vector<1x1x256x64xbf16> to vector<256x64xbf16>
    %cst_9 = arith.constant dense<0.000000e+00> : vector<32x64xf32>
    %13 = tpu.matmul %10, %12, %cst_9 {dimension_numbers = #tpu.dot_dimension_numbers<[1], [0], [0], [1], [0, 0, 1, 1], [], []>} : vector<32x256xbf16>, vector<256x64xbf16>, vector<32x64xf32> -> vector<32x64xf32>
    %c0_10 = arith.constant 0 : index
    %c0_11 = arith.constant 0 : index
    %c0_12 = arith.constant 0 : index
    %c0_13 = arith.constant 0 : index
    %14 = vector.load %arg6[%c0_10, %c0_11, %c0_12, %c0_13] : memref<1x3x32x64xf32, #tpu.memory_space<vmem>>, vector<1x1x32x64xf32>
    %15 = vector.shape_cast %14 : vector<1x1x32x64xf32> to vector<32x64xf32>
    %16 = arith.addf %13, %15 : vector<32x64xf32>
    %c0_14 = arith.constant 0 : index
    %c1 = arith.constant 1 : index
    %c0_15 = arith.constant 0 : index
    %c0_16 = arith.constant 0 : index
    %17 = vector.load %arg5[%c0_14, %c1, %c0_15, %c0_16] : memref<1x3x256x64xbf16, #tpu.memory_space<vmem>>, vector<1x1x256x64xbf16>
    %18 = vector.shape_cast %17 : vector<1x1x256x64xbf16> to vector<256x64xbf16>
    %cst_17 = arith.constant dense<0.000000e+00> : vector<32x64xf32>
    %19 = tpu.matmul %10, %18, %cst_17 {dimension_numbers = #tpu.dot_dimension_numbers<[1], [0], [0], [1], [0, 0, 1, 1], [], []>} : vector<32x256xbf16>, vector<256x64xbf16>, vector<32x64xf32> -> vector<32x64xf32>
    %c0_18 = arith.constant 0 : index
    %c1_19 = arith.constant 1 : index
    %c0_20 = arith.constant 0 : index
    %c0_21 = arith.constant 0 : index
    %20 = vector.load %arg6[%c0_18, %c1_19, %c0_20, %c0_21] : memref<1x3x32x64xf32, #tpu.memory_space<vmem>>, vector<1x1x32x64xf32>
    %21 = vector.shape_cast %20 : vector<1x1x32x64xf32> to vector<32x64xf32>
    %22 = arith.addf %19, %21 : vector<32x64xf32>
    %c0_22 = arith.constant 0 : index
    %c2 = arith.constant 2 : index
    %c0_23 = arith.constant 0 : index
    %c0_24 = arith.constant 0 : index
    %23 = vector.load %arg5[%c0_22, %c2, %c0_23, %c0_24] : memref<1x3x256x64xbf16, #tpu.memory_space<vmem>>, vector<1x1x256x64xbf16>
    %24 = vector.shape_cast %23 : vector<1x1x256x64xbf16> to vector<256x64xbf16>
    %cst_25 = arith.constant dense<0.000000e+00> : vector<32x64xf32>
    %25 = tpu.matmul %10, %24, %cst_25 {dimension_numbers = #tpu.dot_dimension_numbers<[1], [0], [0], [1], [0, 0, 1, 1], [], []>} : vector<32x256xbf16>, vector<256x64xbf16>, vector<32x64xf32> -> vector<32x64xf32>
    %c0_26 = arith.constant 0 : index
    %c2_27 = arith.constant 2 : index
    %c0_28 = arith.constant 0 : index
    %c0_29 = arith.constant 0 : index
    %26 = vector.load %arg6[%c0_26, %c2_27, %c0_28, %c0_29] : memref<1x3x32x64xf32, #tpu.memory_space<vmem>>, vector<1x1x32x64xf32>
    %27 = vector.shape_cast %26 : vector<1x1x32x64xf32> to vector<32x64xf32>
    %28 = arith.addf %25, %27 : vector<32x64xf32>
    %29 = arith.truncf %16 : vector<32x64xf32> to vector<32x64xbf16>
    %30 = arith.truncf %22 : vector<32x64xf32> to vector<32x64xbf16>
    %cst_30 = arith.constant dense<0.000000e+00> : vector<32x32xf32>
    %31 = tpu.matmul %29, %30, %cst_30 {dimension_numbers = #tpu.dot_dimension_numbers<[1], [1], [0], [0], [0, 0, 1, 0], [], []>} : vector<32x64xbf16>, vector<32x64xbf16>, vector<32x32xf32> -> vector<32x32xf32>
    %cst_31 = arith.constant 1.250000e-01 : f32
    %32 = vector.broadcast %cst_31 : f32 to vector<32x32xf32>
    %33 = arith.mulf %31, %32 : vector<32x32xf32>
    %c0_32 = arith.constant 0 : index
    %c0_33 = arith.constant 0 : index
    %34 = vector.load %arg3[%c0_32, %c0_33] : memref<32x32xf32, #tpu.memory_space<vmem>>, vector<32x32xf32>
    %35 = arith.addf %33, %34 : vector<32x32xf32>
    %cst_34 = arith.constant dense<0xFF800000> : vector<32xf32>
    %36 = vector.multi_reduction <maximumf>, %35, %cst_34 [1] : vector<32x32xf32> to vector<32xf32>
    %37 = vector.shape_cast %36 : vector<32xf32> to vector<32x1xf32>
    %38 = vector.broadcast %37 : vector<32x1xf32> to vector<32x32xf32>
    %39 = arith.subf %35, %38 : vector<32x32xf32>
    %40 = math.exp %39 : vector<32x32xf32>
    %cst_35 = arith.constant dense<0.000000e+00> : vector<32xf32>
    %41 = vector.multi_reduction <add>, %40, %cst_35 [1] : vector<32x32xf32> to vector<32xf32>
    %42 = vector.shape_cast %41 : vector<32xf32> to vector<32x1xf32>
    %43 = tpu.reciprocal %42 {approx = true} : vector<32x1xf32> -> vector<32x1xf32>
    %44 = vector.broadcast %43 : vector<32x1xf32> to vector<32x32xf32>
    %45 = arith.mulf %40, %44 : vector<32x32xf32>
    %46 = arith.truncf %45 : vector<32x32xf32> to vector<32x32xbf16>
    %47 = arith.truncf %28 : vector<32x64xf32> to vector<32x64xbf16>
    %cst_36 = arith.constant dense<0.000000e+00> : vector<32x64xf32>
    %48 = tpu.matmul %46, %47, %cst_36 {dimension_numbers = #tpu.dot_dimension_numbers<[1], [0], [0], [1], [0, 0, 1, 1], [], []>} : vector<32x32xbf16>, vector<32x64xbf16>, vector<32x64xf32> -> vector<32x64xf32>
    %49 = vector.extract_strided_slice %48 {offsets = [0, 0], sizes = [16, 64], strides = [1, 1]} : vector<32x64xf32> to vector<16x64xf32>
    %50 = arith.truncf %49 : vector<16x64xf32> to vector<16x64xbf16>
    %c0_37 = arith.constant 0 : index
    %c0_38 = arith.constant 0 : index
    %c0_39 = arith.constant 0 : index
    %c0_40 = arith.constant 0 : index
    %51 = vector.load %arg7[%c0_37, %c0_38, %c0_39, %c0_40] : memref<1x2x64x128xbf16, #tpu.memory_space<vmem>>, vector<1x1x64x128xbf16>
    %52 = vector.shape_cast %51 : vector<1x1x64x128xbf16> to vector<64x128xbf16>
    %cst_41 = arith.constant dense<0.000000e+00> : vector<16x128xf32>
    %53 = tpu.matmul %50, %52, %cst_41 {dimension_numbers = #tpu.dot_dimension_numbers<[1], [0], [0], [1], [0, 0, 1, 1], [], []>} : vector<16x64xbf16>, vector<64x128xbf16>, vector<16x128xf32> -> vector<16x128xf32>
    %54 = vector.extract_strided_slice %48 {offsets = [16, 0], sizes = [16, 64], strides = [1, 1]} : vector<32x64xf32> to vector<16x64xf32>
    %55 = arith.truncf %54 : vector<16x64xf32> to vector<16x64xbf16>
    %c0_42 = arith.constant 0 : index
    %c1_43 = arith.constant 1 : index
    %c0_44 = arith.constant 0 : index
    %c0_45 = arith.constant 0 : index
    %56 = vector.load %arg7[%c0_42, %c1_43, %c0_44, %c0_45] : memref<1x2x64x128xbf16, #tpu.memory_space<vmem>>, vector<1x1x64x128xbf16>
    %57 = vector.shape_cast %56 : vector<1x1x64x128xbf16> to vector<64x128xbf16>
    %cst_46 = arith.constant dense<0.000000e+00> : vector<16x128xf32>
    %58 = tpu.matmul %55, %57, %cst_46 {dimension_numbers = #tpu.dot_dimension_numbers<[1], [0], [0], [1], [0, 0, 1, 1], [], []>} : vector<16x64xbf16>, vector<64x128xbf16>, vector<16x128xf32> -> vector<16x128xf32>
    %59 = arith.addf %53, %58 : vector<16x128xf32>
    %60 = vector.extract_strided_slice %5 {offsets = [0, 0], sizes = [1, 128], strides = [1, 1]} : vector<6x128xf32> to vector<1x128xf32>
    %61 = vector.broadcast %60 : vector<1x128xf32> to vector<16x128xf32>
    %62 = arith.addf %59, %61 : vector<16x128xf32>
    %63 = arith.addf %3, %62 : vector<16x128xf32>
    %64 = vector.extract_strided_slice %5 {offsets = [1, 0], sizes = [1, 128], strides = [1, 1]} : vector<6x128xf32> to vector<1x128xf32>
    %65 = vector.extract_strided_slice %5 {offsets = [2, 0], sizes = [1, 128], strides = [1, 1]} : vector<6x128xf32> to vector<1x128xf32>
    %cst_47 = arith.constant dense<0.000000e+00> : vector<16xf32>
    %66 = vector.multi_reduction <add>, %63, %cst_47 [1] : vector<16x128xf32> to vector<16xf32>
    %67 = vector.shape_cast %66 : vector<16xf32> to vector<16x1xf32>
    %cst_48 = arith.constant 1.280000e+02 : f32
    %68 = vector.broadcast %cst_48 : f32 to vector<16x1xf32>
    %69 = arith.divf %67, %68 : vector<16x1xf32>
    %70 = vector.broadcast %69 : vector<16x1xf32> to vector<16x128xf32>
    %71 = arith.subf %63, %70 : vector<16x128xf32>
    %72 = arith.mulf %71, %71 : vector<16x128xf32>
    %cst_49 = arith.constant dense<0.000000e+00> : vector<16xf32>
    %73 = vector.multi_reduction <add>, %72, %cst_49 [1] : vector<16x128xf32> to vector<16xf32>
    %74 = vector.shape_cast %73 : vector<16xf32> to vector<16x1xf32>
    %cst_50 = arith.constant 1.280000e+02 : f32
    %75 = vector.broadcast %cst_50 : f32 to vector<16x1xf32>
    %76 = arith.divf %74, %75 : vector<16x1xf32>
    %77 = vector.broadcast %69 : vector<16x1xf32> to vector<16x128xf32>
    %78 = arith.subf %63, %77 : vector<16x128xf32>
    %cst_51 = arith.constant 9.99999996E-13 : f32
    %79 = vector.broadcast %cst_51 : f32 to vector<16x1xf32>
    %80 = arith.addf %76, %79 : vector<16x1xf32>
    %81 = math.rsqrt %80 : vector<16x1xf32>
    %82 = vector.broadcast %81 : vector<16x1xf32> to vector<16x128xf32>
    %83 = arith.mulf %78, %82 : vector<16x128xf32>
    %84 = vector.broadcast %64 : vector<1x128xf32> to vector<16x128xf32>
    %85 = arith.mulf %83, %84 : vector<16x128xf32>
    %86 = vector.broadcast %65 : vector<1x128xf32> to vector<16x128xf32>
    %87 = arith.addf %85, %86 : vector<16x128xf32>
    %88 = arith.truncf %87 : vector<16x128xf32> to vector<16x128xbf16>
    %c0_52 = arith.constant 0 : index
    %c0_53 = arith.constant 0 : index
    %c0_54 = arith.constant 0 : index
    %89 = vector.load %arg9[%c0_52, %c0_53, %c0_54] : memref<1x128x512xbf16, #tpu.memory_space<vmem>>, vector<1x128x512xbf16>
    %90 = vector.shape_cast %89 : vector<1x128x512xbf16> to vector<128x512xbf16>
    %cst_55 = arith.constant dense<0.000000e+00> : vector<16x512xf32>
    %91 = tpu.matmul %88, %90, %cst_55 {dimension_numbers = #tpu.dot_dimension_numbers<[1], [0], [0], [1], [0, 0, 1, 1], [], []>} : vector<16x128xbf16>, vector<128x512xbf16>, vector<16x512xf32> -> vector<16x512xf32>
    %c0_56 = arith.constant 0 : index
    %c0_57 = arith.constant 0 : index
    %c0_58 = arith.constant 0 : index
    %92 = vector.load %arg10[%c0_56, %c0_57, %c0_58] : memref<1x1x512xf32, #tpu.memory_space<vmem>>, vector<1x1x512xf32>
    %93 = vector.shape_cast %92 : vector<1x1x512xf32> to vector<1x512xf32>
    %94 = vector.broadcast %93 : vector<1x512xf32> to vector<16x512xf32>
    %95 = arith.addf %91, %94 : vector<16x512xf32>
    %96 = arith.mulf %95, %95 : vector<16x512xf32>
    %97 = arith.mulf %95, %96 : vector<16x512xf32>
    %cst_59 = arith.constant 4.471500e-02 : f32
    %98 = vector.broadcast %cst_59 : f32 to vector<16x512xf32>
    %99 = arith.mulf %98, %97 : vector<16x512xf32>
    %100 = arith.addf %95, %99 : vector<16x512xf32>
    %cst_60 = arith.constant 0.797884583 : f32
    %101 = vector.broadcast %cst_60 : f32 to vector<16x512xf32>
    %102 = arith.mulf %101, %100 : vector<16x512xf32>
    %103 = math.tanh %102 : vector<16x512xf32>
    %cst_61 = arith.constant 1.000000e+00 : f32
    %104 = vector.broadcast %cst_61 : f32 to vector<16x512xf32>
    %105 = arith.addf %104, %103 : vector<16x512xf32>
    %cst_62 = arith.constant 5.000000e-01 : f32
    %106 = vector.broadcast %cst_62 : f32 to vector<16x512xf32>
    %107 = arith.mulf %106, %105 : vector<16x512xf32>
    %108 = arith.mulf %95, %107 : vector<16x512xf32>
    %109 = arith.truncf %108 : vector<16x512xf32> to vector<16x512xbf16>
    %c0_63 = arith.constant 0 : index
    %c0_64 = arith.constant 0 : index
    %c0_65 = arith.constant 0 : index
    %110 = vector.load %arg11[%c0_63, %c0_64, %c0_65] : memref<1x512x128xbf16, #tpu.memory_space<vmem>>, vector<1x512x128xbf16>
    %111 = vector.shape_cast %110 : vector<1x512x128xbf16> to vector<512x128xbf16>
    %cst_66 = arith.constant dense<0.000000e+00> : vector<16x128xf32>
    %112 = tpu.matmul %109, %111, %cst_66 {dimension_numbers = #tpu.dot_dimension_numbers<[1], [0], [0], [1], [0, 0, 1, 1], [], []>} : vector<16x512xbf16>, vector<512x128xbf16>, vector<16x128xf32> -> vector<16x128xf32>
    %113 = vector.extract_strided_slice %5 {offsets = [3, 0], sizes = [1, 128], strides = [1, 1]} : vector<6x128xf32> to vector<1x128xf32>
    %114 = vector.broadcast %113 : vector<1x128xf32> to vector<16x128xf32>
    %115 = arith.addf %112, %114 : vector<16x128xf32>
    %116 = arith.addf %87, %115 : vector<16x128xf32>
    %117 = vector.extract_strided_slice %5 {offsets = [4, 0], sizes = [1, 128], strides = [1, 1]} : vector<6x128xf32> to vector<1x128xf32>
    %118 = vector.extract_strided_slice %5 {offsets = [5, 0], sizes = [1, 128], strides = [1, 1]} : vector<6x128xf32> to vector<1x128xf32>
    %cst_67 = arith.constant dense<0.000000e+00> : vector<16xf32>
    %119 = vector.multi_reduction <add>, %116, %cst_67 [1] : vector<16x128xf32> to vector<16xf32>
    %120 = vector.shape_cast %119 : vector<16xf32> to vector<16x1xf32>
    %cst_68 = arith.constant 1.280000e+02 : f32
    %121 = vector.broadcast %cst_68 : f32 to vector<16x1xf32>
    %122 = arith.divf %120, %121 : vector<16x1xf32>
    %123 = vector.broadcast %122 : vector<16x1xf32> to vector<16x128xf32>
    %124 = arith.subf %116, %123 : vector<16x128xf32>
    %125 = arith.mulf %124, %124 : vector<16x128xf32>
    %cst_69 = arith.constant dense<0.000000e+00> : vector<16xf32>
    %126 = vector.multi_reduction <add>, %125, %cst_69 [1] : vector<16x128xf32> to vector<16xf32>
    %127 = vector.shape_cast %126 : vector<16xf32> to vector<16x1xf32>
    %cst_70 = arith.constant 1.280000e+02 : f32
    %128 = vector.broadcast %cst_70 : f32 to vector<16x1xf32>
    %129 = arith.divf %127, %128 : vector<16x1xf32>
    %130 = vector.broadcast %122 : vector<16x1xf32> to vector<16x128xf32>
    %131 = arith.subf %116, %130 : vector<16x128xf32>
    %cst_71 = arith.constant 9.99999996E-13 : f32
    %132 = vector.broadcast %cst_71 : f32 to vector<16x1xf32>
    %133 = arith.addf %129, %132 : vector<16x1xf32>
    %134 = math.rsqrt %133 : vector<16x1xf32>
    %135 = vector.broadcast %134 : vector<16x1xf32> to vector<16x128xf32>
    %136 = arith.mulf %131, %135 : vector<16x128xf32>
    %137 = vector.broadcast %117 : vector<1x128xf32> to vector<16x128xf32>
    %138 = arith.mulf %136, %137 : vector<16x128xf32>
    %139 = vector.broadcast %118 : vector<1x128xf32> to vector<16x128xf32>
    %140 = arith.addf %138, %139 : vector<16x128xf32>
    %c0_72 = arith.constant 0 : index
    %c0_73 = arith.constant 0 : index
    %141 = vector.load %arg13[%c0_72, %c0_73] : memref<16x128xf32, #tpu.memory_space<vmem>>, vector<16x128xf32>
    tpu.vector_store %arg13[%c0_72, %c0_73], %140 {strides = array<i32>} : memref<16x128xf32, #tpu.memory_space<vmem>>, vector<16x128xf32>,
    %c1_i32 = arith.constant 1 : i32
    %142 = arith.cmpi eq, %arg0, %c1_i32 : i32
    %143 = arith.extui %142 : i1 to i32
    %c0_i32_74 = arith.constant 0 : i32
    %144 = arith.cmpi ne, %143, %c0_i32_74 : i32
    scf.if %144 {
      %145 = tpu.iota {dimensions = array<i32: 0>} : vector<16x128xi32>
      %c0_75 = arith.constant 0 : index
      %146 = memref.load %arg1[%c0_75] : memref<2xi32, #tpu.memory_space<smem>>
      %c0_i32_76 = arith.constant 0 : i32
      %147 = arith.addi %146, %c0_i32_76 : i32
      %148 = vector.broadcast %147 : i32 to vector<16x128xi32>
      %149 = arith.cmpi eq, %145, %148 : vector<16x128xi32>
      %cst_77 = arith.constant 0.000000e+00 : f32
      %150 = vector.broadcast %cst_77 : f32 to vector<16x128xf32>
      %151 = arith.select %149, %140, %150 : vector<16x128xi1>, vector<16x128xf32>
      %cst_78 = arith.constant dense<0.000000e+00> : vector<128xf32>
      %152 = vector.multi_reduction <add>, %151, %cst_78 [0] : vector<16x128xf32> to vector<128xf32>
      %153 = vector.shape_cast %152 : vector<128xf32> to vector<1x128xf32>
      %c1_79 = arith.constant 1 : index
      %154 = memref.load %arg1[%c1_79] : memref<2xi32, #tpu.memory_space<smem>>
      %c8_i32 = arith.constant 8 : i32
      %155 = arith.addi %154, %c8_i32 : i32
      %156 = vector.broadcast %155 : i32 to vector<16x128xi32>
      %157 = arith.cmpi eq, %145, %156 : vector<16x128xi32>
      %cst_80 = arith.constant 0.000000e+00 : f32
      %158 = vector.broadcast %cst_80 : f32 to vector<16x128xf32>
      %159 = arith.select %157, %140, %158 : vector<16x128xi1>, vector<16x128xf32>
      %cst_81 = arith.constant dense<0.000000e+00> : vector<128xf32>
      %160 = vector.multi_reduction <add>, %159, %cst_81 [0] : vector<16x128xf32> to vector<128xf32>
      %161 = vector.shape_cast %160 : vector<128xf32> to vector<1x128xf32>
      %162 = tpu.concatenate %153, %161 in 0 : vector<1x128xf32>, vector<1x128xf32> -> vector<2x128xf32>
      %c0_82 = arith.constant 0 : index
      %c0_83 = arith.constant 0 : index
      %163 = vector.load %arg12[%c0_82, %c0_83] : memref<2x128xf32, #tpu.memory_space<vmem>>, vector<2x128xf32>
      tpu.vector_store %arg12[%c0_82, %c0_83], %162 {strides = array<i32>} : memref<2x128xf32, #tpu.memory_space<vmem>>, vector<2x128xf32>,
    } else {
    }
    return
  }
  func.func @transform_0(%arg0: i32, %arg1: memref<2xi32, #tpu.memory_space<smem>>) -> (i32, i32) {
    %c0_i32 = arith.constant 0 : i32
    %c0_i32_0 = arith.constant 0 : i32
    %c0_i32_1 = arith.constant 0 : i32
    return %c0_i32, %c0_i32_0 : i32, i32
  }
  func.func @transform_1(%arg0: i32, %arg1: memref<2xi32, #tpu.memory_space<smem>>) -> (i32, i32) {
    %c0_i32 = arith.constant 0 : i32
    %c0_i32_0 = arith.constant 0 : i32
    %c0_i32_1 = arith.constant 0 : i32
    return %c0_i32, %c0_i32_0 : i32, i32
  }
  func.func @transform_2(%arg0: i32, %arg1: memref<2xi32, #tpu.memory_space<smem>>) -> (i32, i32) {
    %c0_i32 = arith.constant 0 : i32
    %c0_i32_0 = arith.constant 0 : i32
    %c0_i32_1 = arith.constant 0 : i32
    return %c0_i32, %c0_i32_0 : i32, i32
  }
  func.func @transform_3(%arg0: i32, %arg1: memref<2xi32, #tpu.memory_space<smem>>) -> (i32, i32, i32, i32) {
    %c0_i32 = arith.constant 0 : i32
    %c0_i32_0 = arith.constant 0 : i32
    %c0_i32_1 = arith.constant 0 : i32
    %c0_i32_2 = arith.constant 0 : i32
    return %arg0, %c0_i32, %c0_i32_0, %c0_i32_1 : i32, i32, i32, i32
  }
  func.func @transform_4(%arg0: i32, %arg1: memref<2xi32, #tpu.memory_space<smem>>) -> (i32, i32, i32, i32) {
    %c0_i32 = arith.constant 0 : i32
    %c0_i32_0 = arith.constant 0 : i32
    %c0_i32_1 = arith.constant 0 : i32
    %c0_i32_2 = arith.constant 0 : i32
    return %arg0, %c0_i32, %c0_i32_0, %c0_i32_1 : i32, i32, i32, i32
  }
  func.func @transform_5(%arg0: i32, %arg1: memref<2xi32, #tpu.memory_space<smem>>) -> (i32, i32, i32, i32) {
    %c0_i32 = arith.constant 0 : i32
    %c0_i32_0 = arith.constant 0 : i32
    %c0_i32_1 = arith.constant 0 : i32
    %c0_i32_2 = arith.constant 0 : i32
    return %arg0, %c0_i32, %c0_i32_0, %c0_i32_1 : i32, i32, i32, i32
  }
  func.func @transform_6(%arg0: i32, %arg1: memref<2xi32, #tpu.memory_space<smem>>) -> (i32, i32, i32) {
    %c0_i32 = arith.constant 0 : i32
    %c0_i32_0 = arith.constant 0 : i32
    %c0_i32_1 = arith.constant 0 : i32
    return %arg0, %c0_i32, %c0_i32_0 : i32, i32, i32
  }
  func.func @transform_7(%arg0: i32, %arg1: memref<2xi32, #tpu.memory_space<smem>>) -> (i32, i32, i32) {
    %c0_i32 = arith.constant 0 : i32
    %c0_i32_0 = arith.constant 0 : i32
    %c0_i32_1 = arith.constant 0 : i32
    return %arg0, %c0_i32, %c0_i32_0 : i32, i32, i32
  }
  func.func @transform_8(%arg0: i32, %arg1: memref<2xi32, #tpu.memory_space<smem>>) -> (i32, i32, i32) {
    %c0_i32 = arith.constant 0 : i32
    %c0_i32_0 = arith.constant 0 : i32
    %c0_i32_1 = arith.constant 0 : i32
    return %arg0, %c0_i32, %c0_i32_0 : i32, i32, i32
  }
  func.func @transform_9(%arg0: i32, %arg1: memref<2xi32, #tpu.memory_space<smem>>) -> (i32, i32, i32) {
    %c0_i32 = arith.constant 0 : i32
    %c0_i32_0 = arith.constant 0 : i32
    %c0_i32_1 = arith.constant 0 : i32
    return %arg0, %c0_i32, %c0_i32_0 : i32, i32, i32
  }
  func.func @transform_10(%arg0: i32, %arg1: memref<2xi32, #tpu.memory_space<smem>>) -> (i32, i32) {
    %c0_i32 = arith.constant 0 : i32
    %c0_i32_0 = arith.constant 0 : i32
    %c0_i32_1 = arith.constant 0 : i32
    return %c0_i32, %c0_i32_0 : i32, i32
  }
}

</mosaic_0001>

<llo_original>
// kernel: bert_narrative_graph_forward.1
$region0: #{bert_narrative_graph_forward.1}
  #allocation0 [shape = 'u32[]', space=smem, size = 0x4, offset = 0x4, fixed_abs, tag = 'smem constant byte address 0x4 - core index']
  #allocation1 [shape = 'u32[72,128]{1,0:T(1,128)}', space=vmem, size = 0x9000, scoped, tag = 'internal scratch']
  #allocation2 [shape = 'f32[16,128]{1,0:T(8,128)}', space=vmem, size = 0x2000, scoped, tag = 'scratch operand']
  #allocation3 [shape = 's32[1]{0}', space=sflag, size = 0x4, scoped, tag = 'scoped memory for bert_narrative_graph_forward.1']
  #allocation4 [shape = 'u8[512]{0}', space=smem, size = 0x200, scoped, tag = 'prefetched SMEM operand 0']
  %s0 = inlined_call_operand.vmem [shape: s32[2], index: 0, kind: input, shape index: {}]
  %s1 = inlined_call_operand.vmem [shape: f32[16,128], index: 1, kind: input, shape index: {}]
  %s2 = inlined_call_operand.vmem [shape: f32[32,32], index: 2, kind: input, shape index: {}]
  %s3 = inlined_call_operand.vmem [shape: f32[2,128], index: 3, kind: input, shape index: {}]
  %s4 = inlined_call_operand.vmem [shape: bf16[2,3,256,64], index: 4, kind: input, shape index: {}]
  %s5 = inlined_call_operand.vmem [shape: f32[2,3,32,64], index: 5, kind: input, shape index: {}]
  %s6 = inlined_call_operand.vmem [shape: bf16[2,2,64,128], index: 6, kind: input, shape index: {}]
  %s7 = inlined_call_operand.vmem [shape: f32[2,6,128], index: 7, kind: input, shape index: {}]
  %s8 = inlined_call_operand.vmem [shape: bf16[2,128,512], index: 8, kind: input, shape index: {}]
  %s9 = inlined_call_operand.vmem [shape: f32[2,1,512], index: 9, kind: input, shape index: {}]
  %s10 = inlined_call_operand.vmem [shape: bf16[2,512,128], index: 10, kind: input, shape index: {}]
  %s11 = inlined_call_operand.hbm [shape: f32[2,128], index: 11, kind: output, shape index: {}]
  %s12 = sld [smem:[#allocation0]]
  $region81: #{bert_narrative_graph_forward.1} parent=0
    _
  %s14 = ssub.s32 1, %s12
  %s15 = scalar_select 0, %s14, %s12
  %s17 = sshll.u32 %s0, 4
  %s18 = int_to_ptr.vmem [resolvable:$true] %s17
  %20 = dma.vmem_to_smem %s18, 16, [#allocation4], [#allocation3]
  %22 = dma.done [#allocation3], 16
  %23 = sfence
  $region1: #{bert_narrative_graph_forward.1} parent=0
    #allocation5 [shape = 'u8[1024]{0}', space=vmem, size = 0x400, scoped, tag = 'output window, operand 0, single buffered']
    #allocation6 [shape = 's32[2]{0}', space=sflag, size = 0x8, scoped, tag = 'scoped memory for bert_narrative_graph_forward.1']
    %24 = vsyncpa [#allocation6], 0
    loop: start=0, step=1, limit=4
    $region2: #{bert_narrative_graph_forward.1} parent=1 // loop_pre_header
      _
    $region3: #{bert_narrative_graph_forward.1} parent=1 // loop_header
      %s26 = sphi 0, %s30
      %p27 = scmp.ge.s32.totalorder %s26, 4
      %s34 = sphi 0, %s34
      %s36 = sphi 0, %s34
      %s37 = sphi 0, %s36
      %s51 = sphi 0, %s37
      %s55 = sphi 0, %s55
      %s57 = sphi 0, %s55
      %s58 = sphi 0, %s57
      %s72 = sphi 0, %s58
      %s76 = sphi 0, %s76
      %s78 = sphi 0, %s76
      %s79 = sphi 0, %s78
      %s93 = sphi 0, %s79
      %s99 = sphi 0, %s101
      %s102 = sphi 0, %s99
      %s103 = sphi 0, %s102
      %s119 = sphi 0, %s103
      %s125 = sphi 0, %s127
      %s128 = sphi 0, %s125
      %s129 = sphi 0, %s128
      %s145 = sphi 0, %s129
      %s151 = sphi 0, %s153
      %s154 = sphi 0, %s151
      %s155 = sphi 0, %s154
      %s171 = sphi 0, %s155
      %s177 = sphi 0, %s179
      %s180 = sphi 0, %s177
      %s181 = sphi 0, %s180
      %s197 = sphi 0, %s181
      %s203 = sphi 0, %s205
      %s206 = sphi 0, %s203
      %s207 = sphi 0, %s206
      %s223 = sphi 0, %s207
      %s229 = sphi 0, %s231
      %s232 = sphi 0, %s229
      %s233 = sphi 0, %s232
      %s249 = sphi 0, %s233
      %s255 = sphi 0, %s257
      %s258 = sphi 0, %s255
      %s259 = sphi 0, %s258
      %s275 = sphi 0, %s259
      %s279 = sphi 0, %s279
      %s281 = sphi 0, %s279
      %s282 = sphi 0, %s281
      %s296 = sphi 0, %s282
    $region4: #{bert_narrative_graph_forward.1} parent=1 // loop_header_branch
      %29 = sbr.rel (%p27) target = $region8
    $region5: #{bert_narrative_graph_forward.1} parent=1 // loop_body
      %s31 = ssub.s32 %s26, 1
      %s32 = ssub.s32 %s26, 2
      %s33 = sadd.s32 %s26, 1
      %s35 = sadd.s32 %s34, 1
      %p38 = scmp.eq.s32.totalorder %s26, 1
      %p39 = scmp.ne.s32.totalorder %s34, %s36
      %p40 = scmp.eq.s32.totalorder %s26, 0
      %p41 = por %p39, %p40
      %p42 = scmp.ne.s32.totalorder %s34, %s36
      %p43 = scmp.eq.s32.totalorder %s31, 1
      %p44 = por %p42, %p43
      %p45 = scmp.ne.s32.totalorder %s36, %s37
      %p46 = scmp.eq.s32.totalorder %s31, 0
      %p47 = por %p45, %p46
      %p48 = scmp.ne.s32.totalorder %s36, %s37
      %p49 = scmp.eq.s32.totalorder %s32, 1
      %p50 = por %p48, %p49
      %p52 = scmp.ne.s32.totalorder %s37, %s51
      %p53 = scmp.eq.s32.totalorder %s32, 0
      %p54 = por %p52, %p53
      %s56 = sadd.s32 %s55, 1
      %p59 = scmp.eq.s32.totalorder %s26, 1
      %p60 = scmp.ne.s32.totalorder %s55, %s57
      %p61 = scmp.eq.s32.totalorder %s26, 0
      %p62 = por %p60, %p61
      %p63 = scmp.ne.s32.totalorder %s55, %s57
      %p64 = scmp.eq.s32.totalorder %s31, 1
      %p65 = por %p63, %p64
      %p66 = scmp.ne.s32.totalorder %s57, %s58
      %p67 = scmp.eq.s32.totalorder %s31, 0
      %p68 = por %p66, %p67
      %p69 = scmp.ne.s32.totalorder %s57, %s58
      %p70 = scmp.eq.s32.totalorder %s32, 1
      %p71 = por %p69, %p70
      %p73 = scmp.ne.s32.totalorder %s58, %s72
      %p74 = scmp.eq.s32.totalorder %s32, 0
      %p75 = por %p73, %p74
      %s77 = sadd.s32 %s76, 1
      %p80 = scmp.eq.s32.totalorder %s26, 1
      %p81 = scmp.ne.s32.totalorder %s76, %s78
      %p82 = scmp.eq.s32.totalorder %s26, 0
      %p83 = por %p81, %p82
      %p84 = scmp.ne.s32.totalorder %s76, %s78
      %p85 = scmp.eq.s32.totalorder %s31, 1
      %p86 = por %p84, %p85
      %p87 = scmp.ne.s32.totalorder %s78, %s79
      %p88 = scmp.eq.s32.totalorder %s31, 0
      %p89 = por %p87, %p88
      %p90 = scmp.ne.s32.totalorder %s78, %s79
      %p91 = scmp.eq.s32.totalorder %s32, 1
      %p92 = por %p90, %p91
      %p94 = scmp.ne.s32.totalorder %s79, %s93
      %p95 = scmp.eq.s32.totalorder %s32, 0
      %p96 = por %p94, %p95
      %s97 = ssub.s32 %s26, %s33
      %p98 = scmp.eq.s32.totalorder %s97, 0
      %s100 = sadd.s32 %s99, 1
      %s101 = scalar_select %p98, %s99, %s100
      %p104 = pneg %p98
      %p105 = scmp.eq.s32.totalorder %s26, 1
      %p106 = por %p104, %p105
      %p107 = scmp.ne.s32.totalorder %s99, %s102
      %p108 = scmp.eq.s32.totalorder %s26, 0
      %p109 = por %p107, %p108
      %p110 = scmp.ne.s32.totalorder %s99, %s102
      %p111 = scmp.eq.s32.totalorder %s31, 1
      %p112 = por %p110, %p111
      %p113 = scmp.ne.s32.totalorder %s102, %s103
      %p114 = scmp.eq.s32.totalorder %s31, 0
      %p115 = por %p113, %p114
      %p116 = scmp.ne.s32.totalorder %s102, %s103
      %p117 = scmp.eq.s32.totalorder %s32, 1
      %p118 = por %p116, %p117
      %p120 = scmp.ne.s32.totalorder %s103, %s119
      %p121 = scmp.eq.s32.totalorder %s32, 0
      %p122 = por %p120, %p121
      %s123 = ssub.s32 %s26, %s33
      %p124 = scmp.eq.s32.totalorder %s123, 0
      %s126 = sadd.s32 %s125, 1
      %s127 = scalar_select %p124, %s125, %s126
      %p130 = pneg %p124
      %p131 = scmp.eq.s32.totalorder %s26, 1
      %p132 = por %p130, %p131
      %p133 = scmp.ne.s32.totalorder %s125, %s128
      %p134 = scmp.eq.s32.totalorder %s26, 0
      %p135 = por %p133, %p134
      %p136 = scmp.ne.s32.totalorder %s125, %s128
      %p137 = scmp.eq.s32.totalorder %s31, 1
      %p138 = por %p136, %p137
      %p139 = scmp.ne.s32.totalorder %s128, %s129
      %p140 = scmp.eq.s32.totalorder %s31, 0
      %p141 = por %p139, %p140
      %p142 = scmp.ne.s32.totalorder %s128, %s129
      %p143 = scmp.eq.s32.totalorder %s32, 1
      %p144 = por %p142, %p143
      %p146 = scmp.ne.s32.totalorder %s129, %s145
      %p147 = scmp.eq.s32.totalorder %s32, 0
      %p148 = por %p146, %p147
      %s149 = ssub.s32 %s26, %s33
      %p150 = scmp.eq.s32.totalorder %s149, 0
      %s152 = sadd.s32 %s151, 1
      %s153 = scalar_select %p150, %s151, %s152
      %p156 = pneg %p150
      %p157 = scmp.eq.s32.totalorder %s26, 1
      %p158 = por %p156, %p157
      %p159 = scmp.ne.s32.totalorder %s151, %s154
      %p160 = scmp.eq.s32.totalorder %s26, 0
      %p161 = por %p159, %p160
      %p162 = scmp.ne.s32.totalorder %s151, %s154
      %p163 = scmp.eq.s32.totalorder %s31, 1
      %p164 = por %p162, %p163
      %p165 = scmp.ne.s32.totalorder %s154, %s155
      %p166 = scmp.eq.s32.totalorder %s31, 0
      %p167 = por %p165, %p166
      %p168 = scmp.ne.s32.totalorder %s154, %s155
      %p169 = scmp.eq.s32.totalorder %s32, 1
      %p170 = por %p168, %p169
      %p172 = scmp.ne.s32.totalorder %s155, %s171
      %p173 = scmp.eq.s32.totalorder %s32, 0
      %p174 = por %p172, %p173
      %s175 = ssub.s32 %s26, %s33
      %p176 = scmp.eq.s32.totalorder %s175, 0
      %s178 = sadd.s32 %s177, 1
      %s179 = scalar_select %p176, %s177, %s178
      %p182 = pneg %p176
      %p183 = scmp.eq.s32.totalorder %s26, 1
      %p184 = por %p182, %p183
      %p185 = scmp.ne.s32.totalorder %s177, %s180
      %p186 = scmp.eq.s32.totalorder %s26, 0
      %p187 = por %p185, %p186
      %p188 = scmp.ne.s32.totalorder %s177, %s180
      %p189 = scmp.eq.s32.totalorder %s31, 1
      %p190 = por %p188, %p189
      %p191 = scmp.ne.s32.totalorder %s180, %s181
      %p192 = scmp.eq.s32.totalorder %s31, 0
      %p193 = por %p191, %p192
      %p194 = scmp.ne.s32.totalorder %s180, %s181
      %p195 = scmp.eq.s32.totalorder %s32, 1
      %p196 = por %p194, %p195
      %p198 = scmp.ne.s32.totalorder %s181, %s197
      %p199 = scmp.eq.s32.totalorder %s32, 0
      %p200 = por %p198, %p199
      %s201 = ssub.s32 %s26, %s33
      %p202 = scmp.eq.s32.totalorder %s201, 0
      %s204 = sadd.s32 %s203, 1
      %s205 = scalar_select %p202, %s203, %s204
      %p208 = pneg %p202
      %p209 = scmp.eq.s32.totalorder %s26, 1
      %p210 = por %p208, %p209
      %p211 = scmp.ne.s32.totalorder %s203, %s206
      %p212 = scmp.eq.s32.totalorder %s26, 0
      %p213 = por %p211, %p212
      %p214 = scmp.ne.s32.totalorder %s203, %s206
      %p215 = scmp.eq.s32.totalorder %s31, 1
      %p216 = por %p214, %p215
      %p217 = scmp.ne.s32.totalorder %s206, %s207
      %p218 = scmp.eq.s32.totalorder %s31, 0
      %p219 = por %p217, %p218
      %p220 = scmp.ne.s32.totalorder %s206, %s207
      %p221 = scmp.eq.s32.totalorder %s32, 1
      %p222 = por %p220, %p221
      %p224 = scmp.ne.s32.totalorder %s207, %s223
      %p225 = scmp.eq.s32.totalorder %s32, 0
      %p226 = por %p224, %p225
      %s227 = ssub.s32 %s26, %s33
      %p228 = scmp.eq.s32.totalorder %s227, 0
      %s230 = sadd.s32 %s229, 1
      %s231 = scalar_select %p228, %s229, %s230
      %p234 = pneg %p228
      %p235 = scmp.eq.s32.totalorder %s26, 1
      %p236 = por %p234, %p235
      %p237 = scmp.ne.s32.totalorder %s229, %s232
      %p238 = scmp.eq.s32.totalorder %s26, 0
      %p239 = por %p237, %p238
      %p240 = scmp.ne.s32.totalorder %s229, %s232
      %p241 = scmp.eq.s32.totalorder %s31, 1
      %p242 = por %p240, %p241
      %p243 = scmp.ne.s32.totalorder %s232, %s233
      %p244 = scmp.eq.s32.totalorder %s31, 0
      %p245 = por %p243, %p244
      %p246 = scmp.ne.s32.totalorder %s232, %s233
      %p247 = scmp.eq.s32.totalorder %s32, 1
      %p248 = por %p246, %p247
      %p250 = scmp.ne.s32.totalorder %s233, %s249
      %p251 = scmp.eq.s32.totalorder %s32, 0
      %p252 = por %p250, %p251
      %s253 = ssub.s32 %s26, %s33
      %p254 = scmp.eq.s32.totalorder %s253, 0
      %s256 = sadd.s32 %s255, 1
      %s257 = scalar_select %p254, %s255, %s256
      %p260 = pneg %p254
      %p261 = scmp.eq.s32.totalorder %s26, 1
      %p262 = por %p260, %p261
      %p263 = scmp.ne.s32.totalorder %s255, %s258
      %p264 = scmp.eq.s32.totalorder %s26, 0
      %p265 = por %p263, %p264
      %p266 = scmp.ne.s32.totalorder %s255, %s258
      %p267 = scmp.eq.s32.totalorder %s31, 1
      %p268 = por %p266, %p267
      %p269 = scmp.ne.s32.totalorder %s258, %s259
      %p270 = scmp.eq.s32.totalorder %s31, 0
      %p271 = por %p269, %p270
      %p272 = scmp.ne.s32.totalorder %s258, %s259
      %p273 = scmp.eq.s32.totalorder %s32, 1
      %p274 = por %p272, %p273
      %p276 = scmp.ne.s32.totalorder %s259, %s275
      %p277 = scmp.eq.s32.totalorder %s32, 0
      %p278 = por %p276, %p277
      %s280 = sadd.s32 %s279, 1
      %p283 = scmp.eq.s32.totalorder %s26, 1
      %p284 = scmp.ne.s32.totalorder %s279, %s281
      %p285 = scmp.eq.s32.totalorder %s26, 0
      %p286 = por %p284, %p285
      %p287 = scmp.ne.s32.totalorder %s279, %s281
      %p288 = scmp.eq.s32.totalorder %s31, 1
      %p289 = por %p287, %p288
      %p290 = scmp.ne.s32.totalorder %s281, %s282
      %p291 = scmp.eq.s32.totalorder %s31, 0
      %p292 = por %p290, %p291
      %p293 = scmp.ne.s32.totalorder %s281, %s282
      %p294 = scmp.eq.s32.totalorder %s32, 1
      %p295 = por %p293, %p294
      %p297 = scmp.ne.s32.totalorder %s282, %s296
      %p298 = scmp.eq.s32.totalorder %s32, 0
      %p299 = por %p297, %p298
      %p300 = scmp.le.s32.totalorder 1, %s26
      %p301 = scmp.lt.s32.totalorder %s26, 3
      %p302 = pnand %p300, %p301
      %p303 = pneg %p302
      // Predicated region
      $region9: #{bert_narrative_graph_forward.1} parent=5 // pred_check
        _
      $region10: #{bert_narrative_graph_forward.1} parent=5 // pred_check_branch
        %305 = sbr.rel (%p302) target = $region12
      $region11: #{bert_narrative_graph_forward.1} parent=5 // pred_region
        %s306 = ssub.s32 %s26, 1
        // Predicated region
        $region13: #{bert_narrative_graph_forward.1} parent=11 // pred_check
          %p307 = pneg %p47
        $region14: #{bert_narrative_graph_forward.1} parent=11 // pred_check_branch
          %309 = sbr.rel (%p307) target = $region16
        $region15: #{bert_narrative_graph_forward.1} parent=11 // pred_region
          _
        $region16: #{bert_narrative_graph_forward.1} parent=11 // pred_fallthru
          _
        // Predicated region
        $region17: #{bert_narrative_graph_forward.1} parent=11 // pred_check
          %p310 = pneg %p68
        $region18: #{bert_narrative_graph_forward.1} parent=11 // pred_check_branch
          %312 = sbr.rel (%p310) target = $region20
        $region19: #{bert_narrative_graph_forward.1} parent=11 // pred_region
          _
        $region20: #{bert_narrative_graph_forward.1} parent=11 // pred_fallthru
          _
        // Predicated region
        $region21: #{bert_narrative_graph_forward.1} parent=11 // pred_check
          %p313 = pneg %p89
        $region22: #{bert_narrative_graph_forward.1} parent=11 // pred_check_branch
          %315 = sbr.rel (%p313) target = $region24
        $region23: #{bert_narrative_graph_forward.1} parent=11 // pred_region
          _
        $region24: #{bert_narrative_graph_forward.1} parent=11 // pred_fallthru
          _
      $region12: #{bert_narrative_graph_forward.1} parent=5 // pred_fallthru
        _
      %p316 = scmp.lt.s32.totalorder %s26, 2
      // Predicated region
      $region25: #{bert_narrative_graph_forward.1} parent=5 // pred_check
        %p317 = pneg %p316
      $region26: #{bert_narrative_graph_forward.1} parent=5 // pred_check_branch
        %319 = sbr.rel (%p317) target = $region28
      $region27: #{bert_narrative_graph_forward.1} parent=5 // pred_region
        // Predicated region
        $region29: #{bert_narrative_graph_forward.1} parent=27 // pred_check
          %p320 = pneg %p109
        $region30: #{bert_narrative_graph_forward.1} parent=27 // pred_check_branch
          %322 = sbr.rel (%p320) target = $region32
        $region31: #{bert_narrative_graph_forward.1} parent=27 // pred_region
          %p323 = scmp.lt.s32.totalorder %s26, 1
          %s324 = scalar_select %p323, %s26, 1
          %s325 = smul.addr %s324, 96
          %s326 = smul.addr %s325, 4
          %s327 = scalar_lea.vmem %s4, %s326
        $region32: #{bert_narrative_graph_forward.1} parent=27 // pred_fallthru
          _
        // Predicated region
        $region33: #{bert_narrative_graph_forward.1} parent=27 // pred_check
          %p328 = pneg %p135
        $region34: #{bert_narrative_graph_forward.1} parent=27 // pred_check_branch
          %330 = sbr.rel (%p328) target = $region36
        $region35: #{bert_narrative_graph_forward.1} parent=27 // pred_region
          %p331 = scmp.lt.s32.totalorder %s26, 1
          %s332 = scalar_select %p331, %s26, 1
          %s333 = smul.addr %s332, 12
          %s334 = smul.addr %s333, 8
          %s335 = scalar_lea.vmem %s5, %s334
        $region36: #{bert_narrative_graph_forward.1} parent=27 // pred_fallthru
          _
        // Predicated region
        $region37: #{bert_narrative_graph_forward.1} parent=27 // pred_check
          %p336 = pneg %p161
        $region38: #{bert_narrative_graph_forward.1} parent=27 // pred_check_branch
          %338 = sbr.rel (%p336) target = $region40
        $region39: #{bert_narrative_graph_forward.1} parent=27 // pred_region
          %p339 = scmp.lt.s32.totalorder %s26, 1
          %s340 = scalar_select %p339, %s26, 1
          %s341 = smul.addr %s340, 16
          %s342 = smul.addr %s341, 4
          %s343 = scalar_lea.vmem %s6, %s342
        $region40: #{bert_narrative_graph_forward.1} parent=27 // pred_fallthru
          _
        // Predicated region
        $region41: #{bert_narrative_graph_forward.1} parent=27 // pred_check
          %p344 = pneg %p187
        $region42: #{bert_narrative_graph_forward.1} parent=27 // pred_check_branch
          %346 = sbr.rel (%p344) target = $region44
        $region43: #{bert_narrative_graph_forward.1} parent=27 // pred_region
          %p347 = scmp.lt.s32.totalorder %s26, 1
          %s348 = scalar_select %p347, %s26, 1
          %s349 = smul.addr %s348, 8
          %s350 = scalar_lea.vmem %s7, %s349
        $region44: #{bert_narrative_graph_forward.1} parent=27 // pred_fallthru
          _
        // Predicated region
        $region45: #{bert_narrative_graph_forward.1} parent=27 // pred_check
          %p351 = pneg %p213
        $region46: #{bert_narrative_graph_forward.1} parent=27 // pred_check_branch
          %353 = sbr.rel (%p351) target = $region48
        $region47: #{bert_narrative_graph_forward.1} parent=27 // pred_region
          %p354 = scmp.lt.s32.totalorder %s26, 1
          %s355 = scalar_select %p354, %s26, 1
          %s356 = smul.addr %s355, 64
          %s357 = smul.addr %s356, 4
          %s358 = scalar_lea.vmem %s8, %s357
        $region48: #{bert_narrative_graph_forward.1} parent=27 // pred_fallthru
          _
        // Predicated region
        $region49: #{bert_narrative_graph_forward.1} parent=27 // pred_check
          %p359 = pneg %p239
        $region50: #{bert_narrative_graph_forward.1} parent=27 // pred_check_branch
          %361 = sbr.rel (%p359) target = $region52
        $region51: #{bert_narrative_graph_forward.1} parent=27 // pred_region
          %p362 = scmp.lt.s32.totalorder %s26, 1
          %s363 = scalar_select %p362, %s26, 1
          %s364 = smul.addr %s363, 4
          %s365 = scalar_lea.vmem %s9, %s364
        $region52: #{bert_narrative_graph_forward.1} parent=27 // pred_fallthru
          _
        // Predicated region
        $region53: #{bert_narrative_graph_forward.1} parent=27 // pred_check
          %p366 = pneg %p265
        $region54: #{bert_narrative_graph_forward.1} parent=27 // pred_check_branch
          %368 = sbr.rel (%p366) target = $region56
        $region55: #{bert_narrative_graph_forward.1} parent=27 // pred_region
          %p369 = scmp.lt.s32.totalorder %s26, 1
          %s370 = scalar_select %p369, %s26, 1
          %s371 = smul.addr %s370, 64
          %s372 = smul.addr %s371, 4
          %s373 = scalar_lea.vmem %s10, %s372
        $region56: #{bert_narrative_graph_forward.1} parent=27 // pred_fallthru
          _
      $region28: #{bert_narrative_graph_forward.1} parent=5 // pred_fallthru
        _
      %p374 = scmp.le.s32.totalorder 1, %s26
      %p375 = scmp.lt.s32.totalorder %s26, 3
      %p376 = pnand %p374, %p375
      %p377 = pneg %p376
      // Predicated region
      $region57: #{bert_narrative_graph_forward.1} parent=5 // pred_check
        _
      $region58: #{bert_narrative_graph_forward.1} parent=5 // pred_check_branch
        %379 = sbr.rel (%p376) target = $region60
      $region59: #{bert_narrative_graph_forward.1} parent=5 // pred_region
        %s380 = ssub.s32 %s26, 1
        %p381 = pneg %p47
        %p382 = pneg %p44
        %p383 = pneg %p68
        %p384 = pneg %p65
        %p385 = pneg %p89
        %p386 = pneg %p86
        %p387 = scmp.lt.s32.totalorder %s31, 1
        %s388 = scalar_select %p387, %s31, 1
        %s389 = smul.addr %s388, 96
        %s390 = smul.addr %s389, 4
        %s391 = scalar_lea.vmem %s4, %s390
        %p392 = pneg %p115
        %p393 = pneg %p112
        %p394 = scmp.lt.s32.totalorder %s31, 1
        %s395 = scalar_select %p394, %s31, 1
        %s396 = smul.addr %s395, 12
        %s397 = smul.addr %s396, 8
        %s398 = scalar_lea.vmem %s5, %s397
        %p399 = pneg %p141
        %p400 = pneg %p138
        %p401 = scmp.lt.s32.totalorder %s31, 1
        %s402 = scalar_select %p401, %s31, 1
        %s403 = smul.addr %s402, 16
        %s404 = smul.addr %s403, 4
        %s405 = scalar_lea.vmem %s6, %s404
        %p406 = pneg %p167
        %p407 = pneg %p164
        %p408 = scmp.lt.s32.totalorder %s31, 1
        %s409 = scalar_select %p408, %s31, 1
        %s410 = smul.addr %s409, 8
        %s411 = scalar_lea.vmem %s7, %s410
        %p412 = pneg %p193
        %p413 = pneg %p190
        %p414 = scmp.lt.s32.totalorder %s31, 1
        %s415 = scalar_select %p414, %s31, 1
        %s416 = smul.addr %s415, 64
        %s417 = smul.addr %s416, 4
        %s418 = scalar_lea.vmem %s8, %s417
        %p419 = pneg %p219
        %p420 = pneg %p216
        %p421 = scmp.lt.s32.totalorder %s31, 1
        %s422 = scalar_select %p421, %s31, 1
        %s423 = smul.addr %s422, 4
        %s424 = scalar_lea.vmem %s9, %s423
        %p425 = pneg %p245
        %p426 = pneg %p242
        %p427 = scmp.lt.s32.totalorder %s31, 1
        %s428 = scalar_select %p427, %s31, 1
        %s429 = smul.addr %s428, 64
        %s430 = smul.addr %s429, 4
        %s431 = scalar_lea.vmem %s10, %s430
        %p432 = pneg %p271
        %p433 = pneg %p268
        %p434 = pneg %p292
        %p435 = pneg %p289
        %p436 = scmp.lt.s32.totalorder %s31, 1
        %s437 = scalar_select %p436, %s31, 1
        %s438 = smul.addr %s437, 96
        %s439 = smul.addr %s438, 4
        %s440 = scalar_lea.vmem %s4, %s439
        %p441 = scmp.lt.s32.totalorder %s31, 1
        %s442 = scalar_select %p441, %s31, 1
        %s443 = smul.addr %s442, 12
        %s444 = smul.addr %s443, 8
        %s445 = scalar_lea.vmem %s5, %s444
        %p446 = scmp.lt.s32.totalorder %s31, 1
        %s447 = scalar_select %p446, %s31, 1
        %s448 = smul.addr %s447, 16
        %s449 = smul.addr %s448, 4
        %s450 = scalar_lea.vmem %s6, %s449
        %p451 = scmp.lt.s32.totalorder %s31, 1
        %s452 = scalar_select %p451, %s31, 1
        %s453 = smul.addr %s452, 8
        %s454 = scalar_lea.vmem %s7, %s453
        %p455 = scmp.lt.s32.totalorder %s31, 1
        %s456 = scalar_select %p455, %s31, 1
        %s457 = smul.addr %s456, 64
        %s458 = smul.addr %s457, 4
        %s459 = scalar_lea.vmem %s8, %s458
        %p460 = scmp.lt.s32.totalorder %s31, 1
        %s461 = scalar_select %p460, %s31, 1
        %s462 = smul.addr %s461, 4
        %s463 = scalar_lea.vmem %s9, %s462
        %p464 = scmp.lt.s32.totalorder %s31, 1
        %s465 = scalar_select %p464, %s31, 1
        %s466 = smul.addr %s465, 64
        %s467 = smul.addr %s466, 4
        %s468 = scalar_lea.vmem %s10, %s467
        %p470 = scmp.eq.s32.totalorder %s31, 0
        // Predicated region
        $region61: #{bert_narrative_graph_forward.1} parent=59 // pred_check
          %p471 = pneg %p470
        $region62: #{bert_narrative_graph_forward.1} parent=59 // pred_check_branch
          %473 = sbr.rel (%p471) target = $region64
        $region63: #{bert_narrative_graph_forward.1} parent=59 // pred_region
          %v474 = vld [vmem:[%s3] sm:$0x3]
          %v475 = vld [vmem:[%s1] sm:$0xff]
          %v476 = vld [vmem:[%s1 + $0x8] sm:$0xff]
          %477 = vadd.xlane.f32.xlu0 %v475
          %v478 = vpop.xlane.xlu0 %477
          %479 = vadd.xlane.f32.xlu0 %v476
          %v480 = vpop.xlane.xlu0 %479
          %v481 = vrcp.pop 128.0
          %v482 = vmul.f32 128.0, %v481
          %v483 = vsub.f32 1.0, %v482
          %v484 = vmul.f32 %v481, %v483
          %v485 = vadd.f32 %v481, %v484
          %vm486 = vweird.f32 %v481
          %v487 = vsel %vm486, %v481, %v485
          %v488 = vmul.f32 %v478, %v487
          %v489 = vmul.f32 %v480, %v487
          %v490 = vsub.f32 %v475, %v488
          %v491 = vsub.f32 %v476, %v489
          %v492 = vmul.f32 %v490, %v490
          %v493 = vmul.f32 %v491, %v491
          %494 = vadd.xlane.f32.xlu0 %v492
          %v495 = vpop.xlane.xlu0 %494
          %496 = vadd.xlane.f32.xlu0 %v493
          %v497 = vpop.xlane.xlu0 %496
          %v498 = vmul.f32 %v495, %v487
          %v499 = vmul.f32 %v497, %v487
          %v500 = vadd.f32 %v498, 1e-12
          %v501 = vadd.f32 %v499, 1e-12
          %v502 = vrsqrt.pop %v500
          %v503 = vmul.f32 %v502, %v500
          %v504 = vmul.f32 %v503, %v502
          %v505 = vmul.f32 0.5, %v504
          %v506 = vsub.f32 1.5, %v505
          %v507 = vmul.f32 %v502, %v506
          %vm508 = vweird.f32 %v500
          %vm509 = vweird.f32 %v502
          %vm510 = vmor %vm508, %vm509
          %v511 = vsel %vm510, %v502, %v507
          %v512 = vrsqrt.pop %v501
          %v513 = vmul.f32 %v512, %v501
          %v514 = vmul.f32 %v513, %v512
          %v515 = vmul.f32 0.5, %v514
          %v516 = vsub.f32 1.5, %v515
          %v517 = vmul.f32 %v512, %v516
          %vm518 = vweird.f32 %v501
          %vm519 = vweird.f32 %v512
          %vm520 = vmor %vm518, %vm519
          %v521 = vsel %vm520, %v512, %v517
          %v522 = vmul.f32 %v490, %v511
          %v523 = vmul.f32 %v491, %v521
          %v524 = vperm.slane %v474, 0
          %v525 = vmul.f32 %v522, %v524
          %v526 = vmul.f32 %v523, %v524
          %v527 = vperm.slane %v474, 1
          %v528 = vadd.f32 %v525, %v527
          %v529 = vadd.f32 %v526, %v527
          %530 = vst [vmem:[#allocation2] sm:$0xff] %v528
          %531 = vst [vmem:[#allocation2 + $0x8] sm:$0xff] %v529
        $region64: #{bert_narrative_graph_forward.1} parent=59 // pred_fallthru
          _
        %v532 = vld [vmem:[#allocation2] sm:$0xff]
        %v533 = vld [vmem:[#allocation2 + $0x8] sm:$0xff]
        %v534 = vld [vmem:[%s454] sm:$0x3f]
        %v535 = vpack.c.bf16 %v532, %v532
        %v536 = vpack.c.bf16 %v533, %v533
        %v539 = vunpack.c.l.b16 %v535
        %v540 = vunpack.c.l.b16 %v536
        %v541 = vpack.c.b16 %v540, %v539
        %v543 = vld [vmem:[%s440] sm:$0xf]
        %v544 = vld [vmem:[%s440 + $0x4] sm:$0xf]
        %v545 = vld [vmem:[%s440 + $0x8] sm:$0xf]
        %v546 = vld [vmem:[%s440 + $0xc] sm:$0xf]
        %v547 = vld [vmem:[%s440 + $0x10] sm:$0xf]
        %v548 = vld [vmem:[%s440 + $0x14] sm:$0xf]
        %v549 = vld [vmem:[%s440 + $0x18] sm:$0xf]
        %v550 = vld [vmem:[%s440 + $0x1c] sm:$0xf]
        %v551 = vld [vmem:[%s440 + $0x20] sm:$0xf]
        %v552 = vld [vmem:[%s440 + $0x24] sm:$0xf]
        %v553 = vld [vmem:[%s440 + $0x28] sm:$0xf]
        %v554 = vld [vmem:[%s440 + $0x2c] sm:$0xf]
        %v555 = vld [vmem:[%s440 + $0x30] sm:$0xf]
        %v556 = vld [vmem:[%s440 + $0x34] sm:$0xf]
        %v557 = vld [vmem:[%s440 + $0x38] sm:$0xf]
        %v558 = vld [vmem:[%s440 + $0x3c] sm:$0xf]
        %v559 = vld [vmem:[%s440 + $0x40] sm:$0xf]
        %v560 = vld [vmem:[%s440 + $0x44] sm:$0xf]
        %v561 = vld [vmem:[%s440 + $0x48] sm:$0xf]
        %v562 = vld [vmem:[%s440 + $0x4c] sm:$0xf]
        %v563 = vld [vmem:[%s440 + $0x50] sm:$0xf]
        %v564 = vld [vmem:[%s440 + $0x54] sm:$0xf]
        %v565 = vld [vmem:[%s440 + $0x58] sm:$0xf]
        %v566 = vld [vmem:[%s440 + $0x5c] sm:$0xf]
        %v567 = vld [vmem:[%s440 + $0x60] sm:$0xf]
        %v568 = vld [vmem:[%s440 + $0x64] sm:$0xf]
        %v569 = vld [vmem:[%s440 + $0x68] sm:$0xf]
        %v570 = vld [vmem:[%s440 + $0x6c] sm:$0xf]
        %v571 = vld [vmem:[%s440 + $0x70] sm:$0xf]
        %v572 = vld [vmem:[%s440 + $0x74] sm:$0xf]
        %v573 = vld [vmem:[%s440 + $0x78] sm:$0xf]
        %v574 = vld [vmem:[%s440 + $0x7c] sm:$0xf]
        %v575 = vld [vmem:[%s445] sm:$0xff]
        %v576 = vld [vmem:[%s445 + $0x8] sm:$0xff]
        %v577 = vld [vmem:[%s445 + $0x10] sm:$0xff]
        %v578 = vld [vmem:[%s445 + $0x18] sm:$0xff]
        %v611 = vunpack.c.l.b16 %v543
        %v612 = vunpack.c.l.b16 %v544
        %v613 = vunpack.c.l.b16 %v545
        %v614 = vunpack.c.l.b16 %v546
        %v615 = vunpack.c.l.b16 %v547
        %v616 = vunpack.c.l.b16 %v548
        %v617 = vunpack.c.l.b16 %v549
        %v618 = vunpack.c.l.b16 %v550
        %v619 = vunpack.c.l.b16 %v551
        %v620 = vunpack.c.l.b16 %v552
        %v621 = vunpack.c.l.b16 %v553
        %v622 = vunpack.c.l.b16 %v554
        %v623 = vunpack.c.l.b16 %v555
        %v624 = vunpack.c.l.b16 %v556
        %v625 = vunpack.c.l.b16 %v557
        %v626 = vunpack.c.l.b16 %v558
        %v627 = vunpack.c.l.b16 %v559
        %v628 = vunpack.c.l.b16 %v560
        %v629 = vunpack.c.l.b16 %v561
        %v630 = vunpack.c.l.b16 %v562
        %v631 = vunpack.c.l.b16 %v563
        %v632 = vunpack.c.l.b16 %v564
        %v633 = vunpack.c.l.b16 %v565
        %v634 = vunpack.c.l.b16 %v566
        %v635 = vunpack.c.l.b16 %v567
        %v636 = vunpack.c.l.b16 %v568
        %v637 = vunpack.c.l.b16 %v569
        %v638 = vunpack.c.l.b16 %v570
        %v639 = vunpack.c.l.b16 %v571
        %v640 = vunpack.c.l.b16 %v572
        %v641 = vunpack.c.l.b16 %v573
        %v642 = vunpack.c.l.b16 %v574
        %v643 = vpack.c.b16 %v612, %v611
        %v644 = vpack.c.b16 %v614, %v613
        %v645 = vpack.c.b16 %v616, %v615
        %v646 = vpack.c.b16 %v618, %v617
        %v647 = vpack.c.b16 %v620, %v619
        %v648 = vpack.c.b16 %v622, %v621
        %v649 = vpack.c.b16 %v624, %v623
        %v650 = vpack.c.b16 %v626, %v625
        %v651 = vpack.c.b16 %v628, %v627
        %v652 = vpack.c.b16 %v630, %v629
        %v653 = vpack.c.b16 %v632, %v631
        %v654 = vpack.c.b16 %v634, %v633
        %v655 = vpack.c.b16 %v636, %v635
        %v656 = vpack.c.b16 %v638, %v637
        %v657 = vpack.c.b16 %v640, %v639
        %v658 = vpack.c.b16 %v642, %v641
        %675 = vmatpush.bf16.msra.mxu0 %v650
        %676 = vmatpush.bf16.msra.mxu0 %v649
        %677 = vmatpush.bf16.msra.mxu0 %v648
        %678 = vmatpush.bf16.msra.mxu0 %v647
        %679 = vmatpush.bf16.msra.mxu0 %v646
        %680 = vmatpush.bf16.msra.mxu0 %v645
        %681 = vmatpush.bf16.msra.mxu0 %v644
        %682 = vmatpush.bf16.msra.mxu0 %v643
        %683 = vmatmul.bf16.gmra.mxu0 %v541
        %v684 = vpop.f32.mrf.mxu0
        %v685 = vadd.f32 %v575, %v684
        %v686 = vpop.f32.mrf.mxu0
        %v687 = vadd.f32 %v576, %v686
        %688 = vmatmul.bf16.gmra.mxu0 0
        %v689 = vpop.f32.mrf.mxu0
        %v690 = vadd.f32 %v577, %v689
        %v691 = vpop.f32.mrf.mxu0
        %v692 = vadd.f32 %v578, %v691
        %693 = vdwg.mxu0
        %694 = vmatpush.bf16.msra.mxu0 %v658
        %695 = vmatpush.bf16.msra.mxu0 %v657
        %696 = vmatpush.bf16.msra.mxu0 %v656
        %697 = vmatpush.bf16.msra.mxu0 %v655
        %698 = vmatpush.bf16.msra.mxu0 %v654
        %699 = vmatpush.bf16.msra.mxu0 %v653
        %700 = vmatpush.bf16.msra.mxu0 %v652
        %701 = vmatpush.bf16.msra.mxu0 %v651
        %702 = vmatmul.bf16.gmra.mxu0 0
        %v703 = vpop.f32.mrf.mxu0
        %v704 = vadd.f32 %v685, %v703
        %v705 = vpop.f32.mrf.mxu0
        %v706 = vadd.f32 %v687, %v705
        %707 = vmatmul.bf16.gmra.mxu0 %v541
        %v708 = vpop.f32.mrf.mxu0
        %v709 = vadd.f32 %v690, %v708
        %v710 = vpop.f32.mrf.mxu0
        %v711 = vadd.f32 %v692, %v710
        %712 = vdwg.mxu0
        %s713 = scalar_lea.vmem %s440, 128
        %v714 = vld [vmem:[%s713] sm:$0xf]
        %v715 = vld [vmem:[%s713 + $0x4] sm:$0xf]
        %v716 = vld [vmem:[%s713 + $0x8] sm:$0xf]
        %v717 = vld [vmem:[%s713 + $0xc] sm:$0xf]
        %v718 = vld [vmem:[%s713 + $0x10] sm:$0xf]
        %v719 = vld [vmem:[%s713 + $0x14] sm:$0xf]
        %v720 = vld [vmem:[%s713 + $0x18] sm:$0xf]
        %v721 = vld [vmem:[%s713 + $0x1c] sm:$0xf]
        %v722 = vld [vmem:[%s713 + $0x20] sm:$0xf]
        %v723 = vld [vmem:[%s713 + $0x24] sm:$0xf]
        %v724 = vld [vmem:[%s713 + $0x28] sm:$0xf]
        %v725 = vld [vmem:[%s713 + $0x2c] sm:$0xf]
        %v726 = vld [vmem:[%s713 + $0x30] sm:$0xf]
        %v727 = vld [vmem:[%s713 + $0x34] sm:$0xf]
        %v728 = vld [vmem:[%s713 + $0x38] sm:$0xf]
        %v729 = vld [vmem:[%s713 + $0x3c] sm:$0xf]
        %v730 = vld [vmem:[%s713 + $0x40] sm:$0xf]
        %v731 = vld [vmem:[%s713 + $0x44] sm:$0xf]
        %v732 = vld [vmem:[%s713 + $0x48] sm:$0xf]
        %v733 = vld [vmem:[%s713 + $0x4c] sm:$0xf]
        %v734 = vld [vmem:[%s713 + $0x50] sm:$0xf]
        %v735 = vld [vmem:[%s713 + $0x54] sm:$0xf]
        %v736 = vld [vmem:[%s713 + $0x58] sm:$0xf]
        %v737 = vld [vmem:[%s713 + $0x5c] sm:$0xf]
        %v738 = vld [vmem:[%s713 + $0x60] sm:$0xf]
        %v739 = vld [vmem:[%s713 + $0x64] sm:$0xf]
        %v740 = vld [vmem:[%s713 + $0x68] sm:$0xf]
        %v741 = vld [vmem:[%s713 + $0x6c] sm:$0xf]
        %v742 = vld [vmem:[%s713 + $0x70] sm:$0xf]
        %v743 = vld [vmem:[%s713 + $0x74] sm:$0xf]
        %v744 = vld [vmem:[%s713 + $0x78] sm:$0xf]
        %v745 = vld [vmem:[%s713 + $0x7c] sm:$0xf]
        %s746 = scalar_lea.vmem %s445, 32
        %v747 = vld [vmem:[%s746] sm:$0xff]
        %v748 = vld [vmem:[%s746 + $0x8] sm:$0xff]
        %v749 = vld [vmem:[%s746 + $0x10] sm:$0xff]
        %v750 = vld [vmem:[%s746 + $0x18] sm:$0xff]
        %v783 = vunpack.c.l.b16 %v714
        %v784 = vunpack.c.l.b16 %v715
        %v785 = vunpack.c.l.b16 %v716
        %v786 = vunpack.c.l.b16 %v717
        %v787 = vunpack.c.l.b16 %v718
        %v788 = vunpack.c.l.b16 %v719
        %v789 = vunpack.c.l.b16 %v720
        %v790 = vunpack.c.l.b16 %v721
        %v791 = vunpack.c.l.b16 %v722
        %v792 = vunpack.c.l.b16 %v723
        %v793 = vunpack.c.l.b16 %v724
        %v794 = vunpack.c.l.b16 %v725
        %v795 = vunpack.c.l.b16 %v726
        %v796 = vunpack.c.l.b16 %v727
        %v797 = vunpack.c.l.b16 %v728
        %v798 = vunpack.c.l.b16 %v729
        %v799 = vunpack.c.l.b16 %v730
        %v800 = vunpack.c.l.b16 %v731
        %v801 = vunpack.c.l.b16 %v732
        %v802 = vunpack.c.l.b16 %v733
        %v803 = vunpack.c.l.b16 %v734
        %v804 = vunpack.c.l.b16 %v735
        %v805 = vunpack.c.l.b16 %v736
        %v806 = vunpack.c.l.b16 %v737
        %v807 = vunpack.c.l.b16 %v738
        %v808 = vunpack.c.l.b16 %v739
        %v809 = vunpack.c.l.b16 %v740
        %v810 = vunpack.c.l.b16 %v741
        %v811 = vunpack.c.l.b16 %v742
        %v812 = vunpack.c.l.b16 %v743
        %v813 = vunpack.c.l.b16 %v744
        %v814 = vunpack.c.l.b16 %v745
        %v815 = vpack.c.b16 %v784, %v783
        %v816 = vpack.c.b16 %v786, %v785
        %v817 = vpack.c.b16 %v788, %v787
        %v818 = vpack.c.b16 %v790, %v789
        %v819 = vpack.c.b16 %v792, %v791
        %v820 = vpack.c.b16 %v794, %v793
        %v821 = vpack.c.b16 %v796, %v795
        %v822 = vpack.c.b16 %v798, %v797
        %v823 = vpack.c.b16 %v800, %v799
        %v824 = vpack.c.b16 %v802, %v801
        %v825 = vpack.c.b16 %v804, %v803
        %v826 = vpack.c.b16 %v806, %v805
        %v827 = vpack.c.b16 %v808, %v807
        %v828 = vpack.c.b16 %v810, %v809
        %v829 = vpack.c.b16 %v812, %v811
        %v830 = vpack.c.b16 %v814, %v813
        %847 = vmatpush.bf16.msra.mxu0 %v822
        %848 = vmatpush.bf16.msra.mxu0 %v821
        %849 = vmatpush.bf16.msra.mxu0 %v820
        %850 = vmatpush.bf16.msra.mxu0 %v819
        %851 = vmatpush.bf16.msra.mxu0 %v818
        %852 = vmatpush.bf16.msra.mxu0 %v817
        %853 = vmatpush.bf16.msra.mxu0 %v816
        %854 = vmatpush.bf16.msra.mxu0 %v815
        %855 = vmatmul.bf16.gmra.mxu0 %v541
        %v856 = vpop.f32.mrf.mxu0
        %v857 = vadd.f32 %v747, %v856
        %v858 = vpop.f32.mrf.mxu0
        %v859 = vadd.f32 %v748, %v858
        %860 = vmatmul.bf16.gmra.mxu0 0
        %v861 = vpop.f32.mrf.mxu0
        %v862 = vadd.f32 %v749, %v861
        %v863 = vpop.f32.mrf.mxu0
        %v864 = vadd.f32 %v750, %v863
        %865 = vdwg.mxu0
        %866 = vmatpush.bf16.msra.mxu0 %v830
        %867 = vmatpush.bf16.msra.mxu0 %v829
        %868 = vmatpush.bf16.msra.mxu0 %v828
        %869 = vmatpush.bf16.msra.mxu0 %v827
        %870 = vmatpush.bf16.msra.mxu0 %v826
        %871 = vmatpush.bf16.msra.mxu0 %v825
        %872 = vmatpush.bf16.msra.mxu0 %v824
        %873 = vmatpush.bf16.msra.mxu0 %v823
        %874 = vmatmul.bf16.gmra.mxu0 0
        %v875 = vpop.f32.mrf.mxu0
        %v876 = vadd.f32 %v857, %v875
        %v877 = vpop.f32.mrf.mxu0
        %v878 = vadd.f32 %v859, %v877
        %879 = vmatmul.bf16.gmra.mxu0 %v541
        %v880 = vpop.f32.mrf.mxu0
        %v881 = vadd.f32 %v862, %v880
        %v882 = vpop.f32.mrf.mxu0
        %v883 = vadd.f32 %v864, %v882
        %884 = vdwg.mxu0
        %s885 = scalar_lea.vmem %s440, 256
        %v886 = vld [vmem:[%s885] sm:$0xf]
        %v887 = vld [vmem:[%s885 + $0x4] sm:$0xf]
        %v888 = vld [vmem:[%s885 + $0x8] sm:$0xf]
        %v889 = vld [vmem:[%s885 + $0xc] sm:$0xf]
        %v890 = vld [vmem:[%s885 + $0x10] sm:$0xf]
        %v891 = vld [vmem:[%s885 + $0x14] sm:$0xf]
        %v892 = vld [vmem:[%s885 + $0x18] sm:$0xf]
        %v893 = vld [vmem:[%s885 + $0x1c] sm:$0xf]
        %v894 = vld [vmem:[%s885 + $0x20] sm:$0xf]
        %v895 = vld [vmem:[%s885 + $0x24] sm:$0xf]
        %v896 = vld [vmem:[%s885 + $0x28] sm:$0xf]
        %v897 = vld [vmem:[%s885 + $0x2c] sm:$0xf]
        %v898 = vld [vmem:[%s885 + $0x30] sm:$0xf]
        %v899 = vld [vmem:[%s885 + $0x34] sm:$0xf]
        %v900 = vld [vmem:[%s885 + $0x38] sm:$0xf]
        %v901 = vld [vmem:[%s885 + $0x3c] sm:$0xf]
        %v902 = vld [vmem:[%s885 + $0x40] sm:$0xf]
        %v903 = vld [vmem:[%s885 + $0x44] sm:$0xf]
        %v904 = vld [vmem:[%s885 + $0x48] sm:$0xf]
        %v905 = vld [vmem:[%s885 + $0x4c] sm:$0xf]
        %v906 = vld [vmem:[%s885 + $0x50] sm:$0xf]
        %v907 = vld [vmem:[%s885 + $0x54] sm:$0xf]
        %v908 = vld [vmem:[%s885 + $0x58] sm:$0xf]
        %v909 = vld [vmem:[%s885 + $0x5c] sm:$0xf]
        %v910 = vld [vmem:[%s885 + $0x60] sm:$0xf]
        %v911 = vld [vmem:[%s885 + $0x64] sm:$0xf]
        %v912 = vld [vmem:[%s885 + $0x68] sm:$0xf]
        %v913 = vld [vmem:[%s885 + $0x6c] sm:$0xf]
        %v914 = vld [vmem:[%s885 + $0x70] sm:$0xf]
        %v915 = vld [vmem:[%s885 + $0x74] sm:$0xf]
        %v916 = vld [vmem:[%s885 + $0x78] sm:$0xf]
        %v917 = vld [vmem:[%s885 + $0x7c] sm:$0xf]
        %s918 = scalar_lea.vmem %s445, 64
        %v919 = vld [vmem:[%s918] sm:$0xff]
        %v920 = vld [vmem:[%s918 + $0x8] sm:$0xff]
        %v921 = vld [vmem:[%s918 + $0x10] sm:$0xff]
        %v922 = vld [vmem:[%s918 + $0x18] sm:$0xff]
        %v955 = vunpack.c.l.b16 %v886
        %v956 = vunpack.c.l.b16 %v887
        %v957 = vunpack.c.l.b16 %v888
        %v958 = vunpack.c.l.b16 %v889
        %v959 = vunpack.c.l.b16 %v890
        %v960 = vunpack.c.l.b16 %v891
        %v961 = vunpack.c.l.b16 %v892
        %v962 = vunpack.c.l.b16 %v893
        %v963 = vunpack.c.l.b16 %v894
        %v964 = vunpack.c.l.b16 %v895
        %v965 = vunpack.c.l.b16 %v896
        %v966 = vunpack.c.l.b16 %v897
        %v967 = vunpack.c.l.b16 %v898
        %v968 = vunpack.c.l.b16 %v899
        %v969 = vunpack.c.l.b16 %v900
        %v970 = vunpack.c.l.b16 %v901
        %v971 = vunpack.c.l.b16 %v902
        %v972 = vunpack.c.l.b16 %v903
        %v973 = vunpack.c.l.b16 %v904
        %v974 = vunpack.c.l.b16 %v905
        %v975 = vunpack.c.l.b16 %v906
        %v976 = vunpack.c.l.b16 %v907
        %v977 = vunpack.c.l.b16 %v908
        %v978 = vunpack.c.l.b16 %v909
        %v979 = vunpack.c.l.b16 %v910
        %v980 = vunpack.c.l.b16 %v911
        %v981 = vunpack.c.l.b16 %v912
        %v982 = vunpack.c.l.b16 %v913
        %v983 = vunpack.c.l.b16 %v914
        %v984 = vunpack.c.l.b16 %v915
        %v985 = vunpack.c.l.b16 %v916
        %v986 = vunpack.c.l.b16 %v917
        %v987 = vpack.c.b16 %v956, %v955
        %v988 = vpack.c.b16 %v958, %v957
        %v989 = vpack.c.b16 %v960, %v959
        %v990 = vpack.c.b16 %v962, %v961
        %v991 = vpack.c.b16 %v964, %v963
        %v992 = vpack.c.b16 %v966, %v965
        %v993 = vpack.c.b16 %v968, %v967
        %v994 = vpack.c.b16 %v970, %v969
        %v995 = vpack.c.b16 %v972, %v971
        %v996 = vpack.c.b16 %v974, %v973
        %v997 = vpack.c.b16 %v976, %v975
        %v998 = vpack.c.b16 %v978, %v977
        %v999 = vpack.c.b16 %v980, %v979
        %v1000 = vpack.c.b16 %v982, %v981
        %v1001 = vpack.c.b16 %v984, %v983
        %v1002 = vpack.c.b16 %v986, %v985
        %1019 = vmatpush.bf16.msra.mxu0 %v994
        %1020 = vmatpush.bf16.msra.mxu0 %v993
        %1021 = vmatpush.bf16.msra.mxu0 %v992
        %1022 = vmatpush.bf16.msra.mxu0 %v991
        %1023 = vmatpush.bf16.msra.mxu0 %v990
        %1024 = vmatpush.bf16.msra.mxu0 %v989
        %1025 = vmatpush.bf16.msra.mxu0 %v988
        %1026 = vmatpush.bf16.msra.mxu0 %v987
        %1027 = vmatmul.bf16.gmra.mxu0 %v541
        %v1028 = vpop.f32.mrf.mxu0
        %v1029 = vadd.f32 %v919, %v1028
        %v1030 = vpop.f32.mrf.mxu0
        %v1031 = vadd.f32 %v920, %v1030
        %1032 = vmatmul.bf16.gmra.mxu0 0
        %v1033 = vpop.f32.mrf.mxu0
        %v1034 = vadd.f32 %v921, %v1033
        %v1035 = vpop.f32.mrf.mxu0
        %v1036 = vadd.f32 %v922, %v1035
        %1037 = vdwg.mxu0
        %1038 = vmatpush.bf16.msra.mxu0 %v1002
        %1039 = vmatpush.bf16.msra.mxu0 %v1001
        %1040 = vmatpush.bf16.msra.mxu0 %v1000
        %1041 = vmatpush.bf16.msra.mxu0 %v999
        %1042 = vmatpush.bf16.msra.mxu0 %v998
        %1043 = vmatpush.bf16.msra.mxu0 %v997
        %1044 = vmatpush.bf16.msra.mxu0 %v996
        %1045 = vmatpush.bf16.msra.mxu0 %v995
        %1046 = vmatmul.bf16.gmra.mxu0 0
        %v1047 = vpop.f32.mrf.mxu0
        %v1048 = vadd.f32 %v1029, %v1047
        %v1049 = vpop.f32.mrf.mxu0
        %v1050 = vadd.f32 %v1031, %v1049
        %1051 = vmatmul.bf16.gmra.mxu0 %v541
        %v1052 = vpop.f32.mrf.mxu0
        %v1053 = vadd.f32 %v1034, %v1052
        %v1054 = vpop.f32.mrf.mxu0
        %v1055 = vadd.f32 %v1036, %v1054
        %1056 = vdwg.mxu0
        %v1057 = vpack.c.bf16 %v706, %v704
        %v1058 = vpack.c.bf16 %v711, %v709
        %v1059 = vpack.c.bf16 %v878, %v876
        %v1060 = vpack.c.bf16 %v883, %v881
        %vm1061 = vcmask 523264
        %v1063 = vsel %vm1061, %v1057, 0
        %v1066 = vsel %vm1061, %v1058, 0
        %v1069 = vsel %vm1061, %v1059, 0
        %v1072 = vsel %vm1061, %v1060, 0
        %1074 = vmatpush.bf16.xpose.msra.mxu0 0
        %1075 = vmatpush.bf16.xpose.msra.mxu0 0
        %1076 = vmatpush.bf16.xpose.msra.mxu0 0
        %1077 = vmatpush.bf16.xpose.msra.mxu0 0
        %1078 = vmatpush.bf16.xpose.msra.mxu0 0
        %1079 = vmatpush.bf16.xpose.msra.mxu0 0
        %1080 = vmatpush.bf16.xpose.msra.mxu0 %v1072
        %1081 = vmatpush.bf16.xpose.msra.mxu0 %v1069
        %1082 = vmatmul.bf16.gmra.mxu0 %v1063
        %v1083 = vpop.f32.mrf.mxu0
        %v1084 = vadd.f32 0.0, %v1083
        %v1085 = vpop.f32.mrf.mxu0
        %v1086 = vadd.f32 0.0, %v1085
        %1087 = vmatmul.bf16.gmra.mxu0 %v1066
        %v1088 = vpop.f32.mrf.mxu0
        %v1089 = vadd.f32 0.0, %v1088
        %v1090 = vpop.f32.mrf.mxu0
        %v1091 = vadd.f32 0.0, %v1090
        %1092 = vdwg.mxu0
        %v1093 = vmul.f32 %v1084, 0.125
        %v1094 = vmul.f32 %v1086, 0.125
        %v1095 = vmul.f32 %v1089, 0.125
        %v1096 = vmul.f32 %v1091, 0.125
        %v1097 = vld [vmem:[%s2] sm:$0xff]
        %v1098 = vld [vmem:[%s2 + $0x8] sm:$0xff]
        %v1099 = vld [vmem:[%s2 + $0x10] sm:$0xff]
        %v1100 = vld [vmem:[%s2 + $0x18] sm:$0xff]
        %v1101 = vadd.f32 %v1093, %v1097
        %v1102 = vadd.f32 %v1094, %v1098
        %v1103 = vadd.f32 %v1095, %v1099
        %v1104 = vadd.f32 %v1096, %v1100
        %vm1105 = vcmask 261120
        %v1106 = vsel %vm1105, %v1101, -inf
        %1107 = vmax.xlane.f32.xlu0 %v1106
        %v1108 = vpop.xlane.xlu0 %1107
        %v1109 = vsel %vm1105, %v1102, -inf
        %1110 = vmax.xlane.f32.xlu0 %v1109
        %v1111 = vpop.xlane.xlu0 %1110
        %v1112 = vsel %vm1105, %v1103, -inf
        %1113 = vmax.xlane.f32.xlu0 %v1112
        %v1114 = vpop.xlane.xlu0 %1113
        %v1115 = vsel %vm1105, %v1104, -inf
        %1116 = vmax.xlane.f32.xlu0 %v1115
        %v1117 = vpop.xlane.xlu0 %1116
        %v1118 = vsub.f32 %v1101, %v1108
        %v1119 = vsub.f32 %v1102, %v1111
        %v1120 = vsub.f32 %v1103, %v1114
        %v1121 = vsub.f32 %v1104, %v1117
        %v1122 = vmul.f32 %v1118, 1.442695
        %v1123 = vpow.pop %v1122
        %v1124 = vmul.f32 %v1119, 1.442695
        %v1125 = vpow.pop %v1124
        %v1126 = vmul.f32 %v1120, 1.442695
        %v1127 = vpow.pop %v1126
        %v1128 = vmul.f32 %v1121, 1.442695
        %v1129 = vpow.pop %v1128
        %v1130 = vsel %vm1105, %v1123, 0.0
        %1131 = vadd.xlane.f32.xlu0 %v1130
        %v1132 = vpop.xlane.xlu0 %1131
        %v1133 = vsel %vm1105, %v1125, 0.0
        %1134 = vadd.xlane.f32.xlu0 %v1133
        %v1135 = vpop.xlane.xlu0 %1134
        %v1136 = vsel %vm1105, %v1127, 0.0
        %1137 = vadd.xlane.f32.xlu0 %v1136
        %v1138 = vpop.xlane.xlu0 %1137
        %v1139 = vsel %vm1105, %v1129, 0.0
        %1140 = vadd.xlane.f32.xlu0 %v1139
        %v1141 = vpop.xlane.xlu0 %1140
        %v1142 = vrcp.pop %v1132
        %v1143 = vrcp.pop %v1135
        %v1144 = vrcp.pop %v1138
        %v1145 = vrcp.pop %v1141
        %v1146 = vmul.f32 %v1123, %v1142
        %v1147 = vmul.f32 %v1125, %v1143
        %v1148 = vmul.f32 %v1127, %v1144
        %v1149 = vmul.f32 %v1129, %v1145
        %v1150 = vpack.c.bf16 %v1147, %v1146
        %v1151 = vpack.c.bf16 %v1149, %v1148
        %v1152 = vpack.c.bf16 %v1050, %v1048
        %v1153 = vpack.c.bf16 %v1055, %v1053
        %v1155 = vsel %vm1105, %v1150, 0
        %v1158 = vsel %vm1105, %v1151, 0
        %1160 = vmatpush.bf16.msra.mxu0 0
        %1161 = vmatpush.bf16.msra.mxu0 0
        %1162 = vmatpush.bf16.msra.mxu0 0
        %1163 = vmatpush.bf16.msra.mxu0 0
        %1164 = vmatpush.bf16.msra.mxu0 0
        %1165 = vmatpush.bf16.msra.mxu0 0
        %1166 = vmatpush.bf16.msra.mxu0 %v1153
        %1167 = vmatpush.bf16.msra.mxu0 %v1152
        %1168 = vmatmul.bf16.gmra.mxu0 %v1155
        %v1169 = vpop.f32.mrf.mxu0
        %v1170 = vadd.f32 0.0, %v1169
        %v1171 = vpop.f32.mrf.mxu0
        %v1172 = vadd.f32 0.0, %v1171
        %1173 = vmatmul.bf16.gmra.mxu0 %v1158
        %v1174 = vpop.f32.mrf.mxu0
        %v1175 = vadd.f32 0.0, %v1174
        %v1176 = vpop.f32.mrf.mxu0
        %v1177 = vadd.f32 0.0, %v1176
        %1178 = vdwg.mxu0
        %v1179 = vpack.c.bf16 %v1172, %v1170
        %v1180 = vld [vmem:[%s450] sm:$0xf]
        %v1181 = vld [vmem:[%s450 + $0x4] sm:$0xf]
        %v1182 = vld [vmem:[%s450 + $0x8] sm:$0xf]
        %v1183 = vld [vmem:[%s450 + $0xc] sm:$0xf]
        %v1184 = vld [vmem:[%s450 + $0x10] sm:$0xf]
        %v1185 = vld [vmem:[%s450 + $0x14] sm:$0xf]
        %v1186 = vld [vmem:[%s450 + $0x18] sm:$0xf]
        %v1187 = vld [vmem:[%s450 + $0x1c] sm:$0xf]
        %v1188 = vpack.c.bf16 %v1177, %v1175
        %s1189 = scalar_lea.vmem %s450, 32
        %v1190 = vld [vmem:[%s1189] sm:$0xf]
        %v1191 = vld [vmem:[%s1189 + $0x4] sm:$0xf]
        %v1192 = vld [vmem:[%s1189 + $0x8] sm:$0xf]
        %v1193 = vld [vmem:[%s1189 + $0xc] sm:$0xf]
        %v1194 = vld [vmem:[%s1189 + $0x10] sm:$0xf]
        %v1195 = vld [vmem:[%s1189 + $0x14] sm:$0xf]
        %v1196 = vld [vmem:[%s1189 + $0x18] sm:$0xf]
        %v1197 = vld [vmem:[%s1189 + $0x1c] sm:$0xf]
        %v1206 = vunpack.c.l.b16 %v1190
        %v1207 = vunpack.c.l.b16 %v1191
        %v1208 = vunpack.c.l.b16 %v1192
        %v1209 = vunpack.c.l.b16 %v1193
        %v1210 = vunpack.c.l.b16 %v1194
        %v1211 = vunpack.c.l.b16 %v1195
        %v1212 = vunpack.c.l.b16 %v1196
        %v1213 = vunpack.c.l.b16 %v1197
        %v1214 = vpack.c.b16 %v1207, %v1206
        %v1215 = vpack.c.b16 %v1209, %v1208
        %v1216 = vpack.c.b16 %v1211, %v1210
        %v1217 = vpack.c.b16 %v1213, %v1212
        %v1223 = vsel %vm1061, %v1188, 0
        %1225 = vmatpush.bf16.msra.mxu0 0
        %1226 = vmatpush.bf16.msra.mxu0 0
        %1227 = vmatpush.bf16.msra.mxu0 0
        %1228 = vmatpush.bf16.msra.mxu0 0
        %1229 = vmatpush.bf16.msra.mxu0 %v1217
        %1230 = vmatpush.bf16.msra.mxu0 %v1216
        %1231 = vmatpush.bf16.msra.mxu0 %v1215
        %1232 = vmatpush.bf16.msra.mxu0 %v1214
        %1233 = vmatmul.bf16.gmra.mxu0 %v1223
        %v1234 = vpop.f32.mrf.mxu0
        %v1235 = vadd.f32 0.0, %v1234
        %v1236 = vpop.f32.mrf.mxu0
        %v1237 = vadd.f32 0.0, %v1236
        %1238 = vdwg.mxu0
        %v1247 = vunpack.c.l.b16 %v1180
        %v1248 = vunpack.c.l.b16 %v1181
        %v1249 = vunpack.c.l.b16 %v1182
        %v1250 = vunpack.c.l.b16 %v1183
        %v1251 = vunpack.c.l.b16 %v1184
        %v1252 = vunpack.c.l.b16 %v1185
        %v1253 = vunpack.c.l.b16 %v1186
        %v1254 = vunpack.c.l.b16 %v1187
        %v1255 = vpack.c.b16 %v1248, %v1247
        %v1256 = vpack.c.b16 %v1250, %v1249
        %v1257 = vpack.c.b16 %v1252, %v1251
        %v1258 = vpack.c.b16 %v1254, %v1253
        %v1264 = vsel %vm1061, %v1179, 0
        %1266 = vmatpush.bf16.msra.mxu0 0
        %1267 = vmatpush.bf16.msra.mxu0 0
        %1268 = vmatpush.bf16.msra.mxu0 0
        %1269 = vmatpush.bf16.msra.mxu0 0
        %1270 = vmatpush.bf16.msra.mxu0 %v1258
        %1271 = vmatpush.bf16.msra.mxu0 %v1257
        %1272 = vmatpush.bf16.msra.mxu0 %v1256
        %1273 = vmatpush.bf16.msra.mxu0 %v1255
        %1274 = vmatmul.bf16.gmra.mxu0 %v1264
        %v1275 = vpop.f32.mrf.mxu0
        %v1276 = vadd.f32 %v1235, %v1275
        %v1277 = vpop.f32.mrf.mxu0
        %v1278 = vadd.f32 %v1237, %v1277
        %1279 = vdwg.mxu0
        %v1280 = vperm.slane %v534, 0
        %v1281 = vadd.f32 %v1276, %v1280
        %v1282 = vadd.f32 %v1278, %v1280
        %v1283 = vadd.f32 %v532, %v1281
        %v1284 = vadd.f32 %v533, %v1282
        %1285 = vadd.xlane.f32.xlu0 %v1283
        %v1286 = vpop.xlane.xlu0 %1285
        %1287 = vadd.xlane.f32.xlu0 %v1284
        %v1288 = vpop.xlane.xlu0 %1287
        %v1289 = vrcp.pop 128.0
        %v1290 = vmul.f32 128.0, %v1289
        %v1291 = vsub.f32 1.0, %v1290
        %v1292 = vmul.f32 %v1289, %v1291
        %v1293 = vadd.f32 %v1289, %v1292
        %vm1294 = vweird.f32 %v1289
        %v1295 = vsel %vm1294, %v1289, %v1293
        %v1296 = vmul.f32 %v1286, %v1295
        %v1297 = vmul.f32 %v1288, %v1295
        %v1298 = vsub.f32 %v1283, %v1296
        %v1299 = vsub.f32 %v1284, %v1297
        %v1300 = vmul.f32 %v1298, %v1298
        %v1301 = vmul.f32 %v1299, %v1299
        %1302 = vadd.xlane.f32.xlu0 %v1300
        %v1303 = vpop.xlane.xlu0 %1302
        %1304 = vadd.xlane.f32.xlu0 %v1301
        %v1305 = vpop.xlane.xlu0 %1304
        %v1306 = vmul.f32 %v1303, %v1295
        %v1307 = vmul.f32 %v1305, %v1295
        %v1308 = vadd.f32 %v1306, 1e-12
        %v1309 = vadd.f32 %v1307, 1e-12
        %v1310 = vrsqrt.pop %v1308
        %v1311 = vmul.f32 %v1310, %v1308
        %v1312 = vmul.f32 %v1311, %v1310
        %v1313 = vmul.f32 0.5, %v1312
        %v1314 = vsub.f32 1.5, %v1313
        %v1315 = vmul.f32 %v1310, %v1314
        %vm1316 = vweird.f32 %v1308
        %vm1317 = vweird.f32 %v1310
        %vm1318 = vmor %vm1316, %vm1317
        %v1319 = vsel %vm1318, %v1310, %v1315
        %v1320 = vrsqrt.pop %v1309
        %v1321 = vmul.f32 %v1320, %v1309
        %v1322 = vmul.f32 %v1321, %v1320
        %v1323 = vmul.f32 0.5, %v1322
        %v1324 = vsub.f32 1.5, %v1323
        %v1325 = vmul.f32 %v1320, %v1324
        %vm1326 = vweird.f32 %v1309
        %vm1327 = vweird.f32 %v1320
        %vm1328 = vmor %vm1326, %vm1327
        %v1329 = vsel %vm1328, %v1320, %v1325
        %v1330 = vmul.f32 %v1298, %v1319
        %v1331 = vmul.f32 %v1299, %v1329
        %v1332 = vperm.slane %v534, 1
        %v1333 = vmul.f32 %v1330, %v1332
        %v1334 = vmul.f32 %v1331, %v1332
        %v1335 = vperm.slane %v534, 2
        %v1336 = vadd.f32 %v1333, %v1335
        %v1337 = vadd.f32 %v1334, %v1335
        %v1338 = vpack.c.bf16 %v1337, %v1336
        %v1339 = vld [vmem:[%s459] sm:$0xff]
        %v1340 = vld [vmem:[%s459 + $0x8] sm:$0xff]
        %v1341 = vld [vmem:[%s459 + $0x10] sm:$0xff]
        %v1342 = vld [vmem:[%s459 + $0x18] sm:$0xff]
        %v1343 = vld [vmem:[%s459 + $0x20] sm:$0xff]
        %v1344 = vld [vmem:[%s459 + $0x28] sm:$0xff]
        %v1345 = vld [vmem:[%s459 + $0x30] sm:$0xff]
        %v1346 = vld [vmem:[%s459 + $0x38] sm:$0xff]
        %v1347 = vld [vmem:[%s459 + $0x40] sm:$0xff]
        %v1348 = vld [vmem:[%s459 + $0x48] sm:$0xff]
        %v1349 = vld [vmem:[%s459 + $0x50] sm:$0xff]
        %v1350 = vld [vmem:[%s459 + $0x58] sm:$0xff]
        %v1351 = vld [vmem:[%s459 + $0x60] sm:$0xff]
        %v1352 = vld [vmem:[%s459 + $0x68] sm:$0xff]
        %v1353 = vld [vmem:[%s459 + $0x70] sm:$0xff]
        %v1354 = vld [vmem:[%s459 + $0x78] sm:$0xff]
        %v1355 = vld [vmem:[%s459 + $0x80] sm:$0xff]
        %v1356 = vld [vmem:[%s459 + $0x88] sm:$0xff]
        %v1357 = vld [vmem:[%s459 + $0x90] sm:$0xff]
        %v1358 = vld [vmem:[%s459 + $0x98] sm:$0xff]
        %v1359 = vld [vmem:[%s459 + $0xa0] sm:$0xff]
        %v1360 = vld [vmem:[%s459 + $0xa8] sm:$0xff]
        %v1361 = vld [vmem:[%s459 + $0xb0] sm:$0xff]
        %v1362 = vld [vmem:[%s459 + $0xb8] sm:$0xff]
        %v1363 = vld [vmem:[%s459 + $0xc0] sm:$0xff]
        %v1364 = vld [vmem:[%s459 + $0xc8] sm:$0xff]
        %v1365 = vld [vmem:[%s459 + $0xd0] sm:$0xff]
        %v1366 = vld [vmem:[%s459 + $0xd8] sm:$0xff]
        %v1367 = vld [vmem:[%s459 + $0xe0] sm:$0xff]
        %v1368 = vld [vmem:[%s459 + $0xe8] sm:$0xff]
        %v1369 = vld [vmem:[%s459 + $0xf0] sm:$0xff]
        %v1370 = vld [vmem:[%s459 + $0xf8] sm:$0xff]
        %v1371 = vld [vmem:[%s463] sm:$0xf]
        %v1373 = vperm.slane %v1371, 0
        %v1374 = vperm.slane %v1371, 1
        %v1375 = vperm.slane %v1371, 2
        %v1376 = vperm.slane %v1371, 3
        %v1413 = vunpack.c.l.b16 %v1339
        %v1414 = vunpack.c.h.b16 %v1339
        %v1415 = vunpack.c.l.b16 %v1340
        %v1416 = vunpack.c.h.b16 %v1340
        %v1417 = vunpack.c.l.b16 %v1341
        %v1418 = vunpack.c.h.b16 %v1341
        %v1419 = vunpack.c.l.b16 %v1342
        %v1420 = vunpack.c.h.b16 %v1342
        %v1421 = vunpack.c.l.b16 %v1343
        %v1422 = vunpack.c.h.b16 %v1343
        %v1423 = vunpack.c.l.b16 %v1344
        %v1424 = vunpack.c.h.b16 %v1344
        %v1425 = vunpack.c.l.b16 %v1345
        %v1426 = vunpack.c.h.b16 %v1345
        %v1427 = vunpack.c.l.b16 %v1346
        %v1428 = vunpack.c.h.b16 %v1346
        %v1429 = vunpack.c.l.b16 %v1347
        %v1430 = vunpack.c.h.b16 %v1347
        %v1431 = vunpack.c.l.b16 %v1348
        %v1432 = vunpack.c.h.b16 %v1348
        %v1433 = vunpack.c.l.b16 %v1349
        %v1434 = vunpack.c.h.b16 %v1349
        %v1435 = vunpack.c.l.b16 %v1350
        %v1436 = vunpack.c.h.b16 %v1350
        %v1437 = vunpack.c.l.b16 %v1351
        %v1438 = vunpack.c.h.b16 %v1351
        %v1439 = vunpack.c.l.b16 %v1352
        %v1440 = vunpack.c.h.b16 %v1352
        %v1441 = vunpack.c.l.b16 %v1353
        %v1442 = vunpack.c.h.b16 %v1353
        %v1443 = vunpack.c.l.b16 %v1354
        %v1444 = vunpack.c.h.b16 %v1354
        %v1445 = vunpack.c.l.b16 %v1355
        %v1446 = vunpack.c.h.b16 %v1355
        %v1447 = vunpack.c.l.b16 %v1356
        %v1448 = vunpack.c.h.b16 %v1356
        %v1449 = vunpack.c.l.b16 %v1357
        %v1450 = vunpack.c.h.b16 %v1357
        %v1451 = vunpack.c.l.b16 %v1358
        %v1452 = vunpack.c.h.b16 %v1358
        %v1453 = vunpack.c.l.b16 %v1359
        %v1454 = vunpack.c.h.b16 %v1359
        %v1455 = vunpack.c.l.b16 %v1360
        %v1456 = vunpack.c.h.b16 %v1360
        %v1457 = vunpack.c.l.b16 %v1361
        %v1458 = vunpack.c.h.b16 %v1361
        %v1459 = vunpack.c.l.b16 %v1362
        %v1460 = vunpack.c.h.b16 %v1362
        %v1461 = vunpack.c.l.b16 %v1363
        %v1462 = vunpack.c.h.b16 %v1363
        %v1463 = vunpack.c.l.b16 %v1364
        %v1464 = vunpack.c.h.b16 %v1364
        %v1465 = vunpack.c.l.b16 %v1365
        %v1466 = vunpack.c.h.b16 %v1365
        %v1467 = vunpack.c.l.b16 %v1366
        %v1468 = vunpack.c.h.b16 %v1366
        %v1469 = vunpack.c.l.b16 %v1367
        %v1470 = vunpack.c.h.b16 %v1367
        %v1471 = vunpack.c.l.b16 %v1368
        %v1472 = vunpack.c.h.b16 %v1368
        %v1473 = vunpack.c.l.b16 %v1369
        %v1474 = vunpack.c.h.b16 %v1369
        %v1475 = vunpack.c.l.b16 %v1370
        %v1476 = vunpack.c.h.b16 %v1370
        %v1477 = vpack.c.b16 %v1417, %v1413
        %v1478 = vpack.c.b16 %v1418, %v1414
        %v1479 = vpack.c.b16 %v1419, %v1415
        %v1480 = vpack.c.b16 %v1420, %v1416
        %v1481 = vpack.c.b16 %v1425, %v1421
        %v1482 = vpack.c.b16 %v1426, %v1422
        %v1483 = vpack.c.b16 %v1427, %v1423
        %v1484 = vpack.c.b16 %v1428, %v1424
        %v1485 = vpack.c.b16 %v1433, %v1429
        %v1486 = vpack.c.b16 %v1434, %v1430
        %v1487 = vpack.c.b16 %v1435, %v1431
        %v1488 = vpack.c.b16 %v1436, %v1432
        %v1489 = vpack.c.b16 %v1441, %v1437
        %v1490 = vpack.c.b16 %v1442, %v1438
        %v1491 = vpack.c.b16 %v1443, %v1439
        %v1492 = vpack.c.b16 %v1444, %v1440
        %v1493 = vpack.c.b16 %v1449, %v1445
        %v1494 = vpack.c.b16 %v1450, %v1446
        %v1495 = vpack.c.b16 %v1451, %v1447
        %v1496 = vpack.c.b16 %v1452, %v1448
        %v1497 = vpack.c.b16 %v1457, %v1453
        %v1498 = vpack.c.b16 %v1458, %v1454
        %v1499 = vpack.c.b16 %v1459, %v1455
        %v1500 = vpack.c.b16 %v1460, %v1456
        %v1501 = vpack.c.b16 %v1465, %v1461
        %v1502 = vpack.c.b16 %v1466, %v1462
        %v1503 = vpack.c.b16 %v1467, %v1463
        %v1504 = vpack.c.b16 %v1468, %v1464
        %v1505 = vpack.c.b16 %v1473, %v1469
        %v1506 = vpack.c.b16 %v1474, %v1470
        %v1507 = vpack.c.b16 %v1475, %v1471
        %v1508 = vpack.c.b16 %v1476, %v1472
        %1541 = vmatpush.bf16.msra.mxu0 %v1505
        %1542 = vmatpush.bf16.msra.mxu0 %v1501
        %1543 = vmatpush.bf16.msra.mxu0 %v1497
        %1544 = vmatpush.bf16.msra.mxu0 %v1493
        %1545 = vmatpush.bf16.msra.mxu0 %v1489
        %1546 = vmatpush.bf16.msra.mxu0 %v1485
        %1547 = vmatpush.bf16.msra.mxu0 %v1481
        %1548 = vmatpush.bf16.msra.mxu0 %v1477
        %1549 = vmatmul.bf16.gmra.mxu0 %v1338
        %v1550 = vpop.f32.mrf.mxu0
        %v1551 = vadd.f32 %v1373, %v1550
        %v1552 = vpop.f32.mrf.mxu0
        %v1553 = vadd.f32 %v1373, %v1552
        %1554 = vdwg.mxu0
        %1555 = vmatpush.bf16.msra.mxu0 %v1506
        %1556 = vmatpush.bf16.msra.mxu0 %v1502
        %1557 = vmatpush.bf16.msra.mxu0 %v1498
        %1558 = vmatpush.bf16.msra.mxu0 %v1494
        %1559 = vmatpush.bf16.msra.mxu0 %v1490
        %1560 = vmatpush.bf16.msra.mxu0 %v1486
        %1561 = vmatpush.bf16.msra.mxu0 %v1482
        %1562 = vmatpush.bf16.msra.mxu0 %v1478
        %1563 = vmatmul.bf16.gmra.mxu0 %v1338
        %v1564 = vpop.f32.mrf.mxu0
        %v1565 = vadd.f32 %v1374, %v1564
        %v1566 = vpop.f32.mrf.mxu0
        %v1567 = vadd.f32 %v1374, %v1566
        %1568 = vdwg.mxu0
        %1569 = vmatpush.bf16.msra.mxu0 %v1507
        %1570 = vmatpush.bf16.msra.mxu0 %v1503
        %1571 = vmatpush.bf16.msra.mxu0 %v1499
        %1572 = vmatpush.bf16.msra.mxu0 %v1495
        %1573 = vmatpush.bf16.msra.mxu0 %v1491
        %1574 = vmatpush.bf16.msra.mxu0 %v1487
        %1575 = vmatpush.bf16.msra.mxu0 %v1483
        %1576 = vmatpush.bf16.msra.mxu0 %v1479
        %1577 = vmatmul.bf16.gmra.mxu0 %v1338
        %v1578 = vpop.f32.mrf.mxu0
        %v1579 = vadd.f32 %v1375, %v1578
        %v1580 = vpop.f32.mrf.mxu0
        %v1581 = vadd.f32 %v1375, %v1580
        %1582 = vdwg.mxu0
        %1583 = vmatpush.bf16.msra.mxu0 %v1508
        %1584 = vmatpush.bf16.msra.mxu0 %v1504
        %1585 = vmatpush.bf16.msra.mxu0 %v1500
        %1586 = vmatpush.bf16.msra.mxu0 %v1496
        %1587 = vmatpush.bf16.msra.mxu0 %v1492
        %1588 = vmatpush.bf16.msra.mxu0 %v1488
        %1589 = vmatpush.bf16.msra.mxu0 %v1484
        %1590 = vmatpush.bf16.msra.mxu0 %v1480
        %1591 = vmatmul.bf16.gmra.mxu0 %v1338
        %v1592 = vpop.f32.mrf.mxu0
        %v1593 = vadd.f32 %v1376, %v1592
        %v1594 = vpop.f32.mrf.mxu0
        %v1595 = vadd.f32 %v1376, %v1594
        %1596 = vdwg.mxu0
        %v1597 = vmul.f32 %v1551, %v1551
        %v1598 = vmul.f32 %v1565, %v1565
        %v1599 = vmul.f32 %v1579, %v1579
        %v1600 = vmul.f32 %v1593, %v1593
        %v1601 = vmul.f32 %v1553, %v1553
        %v1602 = vmul.f32 %v1567, %v1567
        %v1603 = vmul.f32 %v1581, %v1581
        %v1604 = vmul.f32 %v1595, %v1595
        %v1605 = vmul.f32 %v1551, %v1597
        %v1606 = vmul.f32 %v1565, %v1598
        %v1607 = vmul.f32 %v1579, %v1599
        %v1608 = vmul.f32 %v1593, %v1600
        %v1609 = vmul.f32 %v1553, %v1601
        %v1610 = vmul.f32 %v1567, %v1602
        %v1611 = vmul.f32 %v1581, %v1603
        %v1612 = vmul.f32 %v1595, %v1604
        %v1613 = vmul.f32 %v1605, 0.044715
        %v1614 = vmul.f32 %v1606, 0.044715
        %v1615 = vmul.f32 %v1607, 0.044715
        %v1616 = vmul.f32 %v1608, 0.044715
        %v1617 = vmul.f32 %v1609, 0.044715
        %v1618 = vmul.f32 %v1610, 0.044715
        %v1619 = vmul.f32 %v1611, 0.044715
        %v1620 = vmul.f32 %v1612, 0.044715
        %v1621 = vadd.f32 %v1551, %v1613
        %v1622 = vadd.f32 %v1565, %v1614
        %v1623 = vadd.f32 %v1579, %v1615
        %v1624 = vadd.f32 %v1593, %v1616
        %v1625 = vadd.f32 %v1553, %v1617
        %v1626 = vadd.f32 %v1567, %v1618
        %v1627 = vadd.f32 %v1581, %v1619
        %v1628 = vadd.f32 %v1595, %v1620
        %v1629 = vmul.f32 %v1621, 0.7978846
        %v1630 = vmul.f32 %v1622, 0.7978846
        %v1631 = vmul.f32 %v1623, 0.7978846
        %v1632 = vmul.f32 %v1624, 0.7978846
        %v1633 = vmul.f32 %v1625, 0.7978846
        %v1634 = vmul.f32 %v1626, 0.7978846
        %v1635 = vmul.f32 %v1627, 0.7978846
        %v1636 = vmul.f32 %v1628, 0.7978846
        %v1637 = vtanh.pop %v1629
        %v1638 = vtanh.pop %v1630
        %v1639 = vtanh.pop %v1631
        %v1640 = vtanh.pop %v1632
        %v1641 = vtanh.pop %v1633
        %v1642 = vtanh.pop %v1634
        %v1643 = vtanh.pop %v1635
        %v1644 = vtanh.pop %v1636
        %v1645 = vadd.f32 %v1637, 1.0
        %v1646 = vadd.f32 %v1638, 1.0
        %v1647 = vadd.f32 %v1639, 1.0
        %v1648 = vadd.f32 %v1640, 1.0
        %v1649 = vadd.f32 %v1641, 1.0
        %v1650 = vadd.f32 %v1642, 1.0
        %v1651 = vadd.f32 %v1643, 1.0
        %v1652 = vadd.f32 %v1644, 1.0
        %v1653 = vmul.f32 %v1645, 0.5
        %v1654 = vmul.f32 %v1646, 0.5
        %v1655 = vmul.f32 %v1647, 0.5
        %v1656 = vmul.f32 %v1648, 0.5
        %v1657 = vmul.f32 %v1649, 0.5
        %v1658 = vmul.f32 %v1650, 0.5
        %v1659 = vmul.f32 %v1651, 0.5
        %v1660 = vmul.f32 %v1652, 0.5
        %v1661 = vmul.f32 %v1551, %v1653
        %v1662 = vmul.f32 %v1565, %v1654
        %v1663 = vmul.f32 %v1579, %v1655
        %v1664 = vmul.f32 %v1593, %v1656
        %v1665 = vmul.f32 %v1553, %v1657
        %v1666 = vmul.f32 %v1567, %v1658
        %v1667 = vmul.f32 %v1581, %v1659
        %v1668 = vmul.f32 %v1595, %v1660
        %v1669 = vpack.c.bf16 %v1665, %v1661
        %v1670 = vpack.c.bf16 %v1666, %v1662
        %v1671 = vpack.c.bf16 %v1667, %v1663
        %v1672 = vpack.c.bf16 %v1668, %v1664
        %v1673 = vld [vmem:[%s468] sm:$0xf]
        %v1674 = vld [vmem:[%s468 + $0x4] sm:$0xf]
        %v1675 = vld [vmem:[%s468 + $0x8] sm:$0xf]
        %v1676 = vld [vmem:[%s468 + $0xc] sm:$0xf]
        %v1677 = vld [vmem:[%s468 + $0x10] sm:$0xf]
        %v1678 = vld [vmem:[%s468 + $0x14] sm:$0xf]
        %v1679 = vld [vmem:[%s468 + $0x18] sm:$0xf]
        %v1680 = vld [vmem:[%s468 + $0x1c] sm:$0xf]
        %v1681 = vld [vmem:[%s468 + $0x20] sm:$0xf]
        %v1682 = vld [vmem:[%s468 + $0x24] sm:$0xf]
        %v1683 = vld [vmem:[%s468 + $0x28] sm:$0xf]
        %v1684 = vld [vmem:[%s468 + $0x2c] sm:$0xf]
        %v1685 = vld [vmem:[%s468 + $0x30] sm:$0xf]
        %v1686 = vld [vmem:[%s468 + $0x34] sm:$0xf]
        %v1687 = vld [vmem:[%s468 + $0x38] sm:$0xf]
        %v1688 = vld [vmem:[%s468 + $0x3c] sm:$0xf]
        %v1689 = vld [vmem:[%s468 + $0x40] sm:$0xf]
        %v1690 = vld [vmem:[%s468 + $0x44] sm:$0xf]
        %v1691 = vld [vmem:[%s468 + $0x48] sm:$0xf]
        %v1692 = vld [vmem:[%s468 + $0x4c] sm:$0xf]
        %v1693 = vld [vmem:[%s468 + $0x50] sm:$0xf]
        %v1694 = vld [vmem:[%s468 + $0x54] sm:$0xf]
        %v1695 = vld [vmem:[%s468 + $0x58] sm:$0xf]
        %v1696 = vld [vmem:[%s468 + $0x5c] sm:$0xf]
        %v1697 = vld [vmem:[%s468 + $0x60] sm:$0xf]
        %v1698 = vld [vmem:[%s468 + $0x64] sm:$0xf]
        %v1699 = vld [vmem:[%s468 + $0x68] sm:$0xf]
        %v1700 = vld [vmem:[%s468 + $0x6c] sm:$0xf]
        %v1701 = vld [vmem:[%s468 + $0x70] sm:$0xf]
        %v1702 = vld [vmem:[%s468 + $0x74] sm:$0xf]
        %v1703 = vld [vmem:[%s468 + $0x78] sm:$0xf]
        %v1704 = vld [vmem:[%s468 + $0x7c] sm:$0xf]
        %v1705 = vld [vmem:[%s468 + $0x80] sm:$0xf]
        %v1706 = vld [vmem:[%s468 + $0x84] sm:$0xf]
        %v1707 = vld [vmem:[%s468 + $0x88] sm:$0xf]
        %v1708 = vld [vmem:[%s468 + $0x8c] sm:$0xf]
        %v1709 = vld [vmem:[%s468 + $0x90] sm:$0xf]
        %v1710 = vld [vmem:[%s468 + $0x94] sm:$0xf]
        %v1711 = vld [vmem:[%s468 + $0x98] sm:$0xf]
        %v1712 = vld [vmem:[%s468 + $0x9c] sm:$0xf]
        %v1713 = vld [vmem:[%s468 + $0xa0] sm:$0xf]
        %v1714 = vld [vmem:[%s468 + $0xa4] sm:$0xf]
        %v1715 = vld [vmem:[%s468 + $0xa8] sm:$0xf]
        %v1716 = vld [vmem:[%s468 + $0xac] sm:$0xf]
        %v1717 = vld [vmem:[%s468 + $0xb0] sm:$0xf]
        %v1718 = vld [vmem:[%s468 + $0xb4] sm:$0xf]
        %v1719 = vld [vmem:[%s468 + $0xb8] sm:$0xf]
        %v1720 = vld [vmem:[%s468 + $0xbc] sm:$0xf]
        %v1721 = vld [vmem:[%s468 + $0xc0] sm:$0xf]
        %v1722 = vld [vmem:[%s468 + $0xc4] sm:$0xf]
        %v1723 = vld [vmem:[%s468 + $0xc8] sm:$0xf]
        %v1724 = vld [vmem:[%s468 + $0xcc] sm:$0xf]
        %v1725 = vld [vmem:[%s468 + $0xd0] sm:$0xf]
        %v1726 = vld [vmem:[%s468 + $0xd4] sm:$0xf]
        %v1727 = vld [vmem:[%s468 + $0xd8] sm:$0xf]
        %v1728 = vld [vmem:[%s468 + $0xdc] sm:$0xf]
        %v1729 = vld [vmem:[%s468 + $0xe0] sm:$0xf]
        %v1730 = vld [vmem:[%s468 + $0xe4] sm:$0xf]
        %v1731 = vld [vmem:[%s468 + $0xe8] sm:$0xf]
        %v1732 = vld [vmem:[%s468 + $0xec] sm:$0xf]
        %v1733 = vld [vmem:[%s468 + $0xf0] sm:$0xf]
        %v1734 = vld [vmem:[%s468 + $0xf4] sm:$0xf]
        %v1735 = vld [vmem:[%s468 + $0xf8] sm:$0xf]
        %v1736 = vld [vmem:[%s468 + $0xfc] sm:$0xf]
        %v1737 = vperm.slane %v534, 3
        %v1802 = vunpack.c.l.b16 %v1673
        %v1803 = vunpack.c.l.b16 %v1674
        %v1804 = vunpack.c.l.b16 %v1675
        %v1805 = vunpack.c.l.b16 %v1676
        %v1806 = vunpack.c.l.b16 %v1677
        %v1807 = vunpack.c.l.b16 %v1678
        %v1808 = vunpack.c.l.b16 %v1679
        %v1809 = vunpack.c.l.b16 %v1680
        %v1810 = vunpack.c.l.b16 %v1681
        %v1811 = vunpack.c.l.b16 %v1682
        %v1812 = vunpack.c.l.b16 %v1683
        %v1813 = vunpack.c.l.b16 %v1684
        %v1814 = vunpack.c.l.b16 %v1685
        %v1815 = vunpack.c.l.b16 %v1686
        %v1816 = vunpack.c.l.b16 %v1687
        %v1817 = vunpack.c.l.b16 %v1688
        %v1818 = vunpack.c.l.b16 %v1689
        %v1819 = vunpack.c.l.b16 %v1690
        %v1820 = vunpack.c.l.b16 %v1691
        %v1821 = vunpack.c.l.b16 %v1692
        %v1822 = vunpack.c.l.b16 %v1693
        %v1823 = vunpack.c.l.b16 %v1694
        %v1824 = vunpack.c.l.b16 %v1695
        %v1825 = vunpack.c.l.b16 %v1696
        %v1826 = vunpack.c.l.b16 %v1697
        %v1827 = vunpack.c.l.b16 %v1698
        %v1828 = vunpack.c.l.b16 %v1699
        %v1829 = vunpack.c.l.b16 %v1700
        %v1830 = vunpack.c.l.b16 %v1701
        %v1831 = vunpack.c.l.b16 %v1702
        %v1832 = vunpack.c.l.b16 %v1703
        %v1833 = vunpack.c.l.b16 %v1704
        %v1834 = vunpack.c.l.b16 %v1705
        %v1835 = vunpack.c.l.b16 %v1706
        %v1836 = vunpack.c.l.b16 %v1707
        %v1837 = vunpack.c.l.b16 %v1708
        %v1838 = vunpack.c.l.b16 %v1709
        %v1839 = vunpack.c.l.b16 %v1710
        %v1840 = vunpack.c.l.b16 %v1711
        %v1841 = vunpack.c.l.b16 %v1712
        %v1842 = vunpack.c.l.b16 %v1713
        %v1843 = vunpack.c.l.b16 %v1714
        %v1844 = vunpack.c.l.b16 %v1715
        %v1845 = vunpack.c.l.b16 %v1716
        %v1846 = vunpack.c.l.b16 %v1717
        %v1847 = vunpack.c.l.b16 %v1718
        %v1848 = vunpack.c.l.b16 %v1719
        %v1849 = vunpack.c.l.b16 %v1720
        %v1850 = vunpack.c.l.b16 %v1721
        %v1851 = vunpack.c.l.b16 %v1722
        %v1852 = vunpack.c.l.b16 %v1723
        %v1853 = vunpack.c.l.b16 %v1724
        %v1854 = vunpack.c.l.b16 %v1725
        %v1855 = vunpack.c.l.b16 %v1726
        %v1856 = vunpack.c.l.b16 %v1727
        %v1857 = vunpack.c.l.b16 %v1728
        %v1858 = vunpack.c.l.b16 %v1729
        %v1859 = vunpack.c.l.b16 %v1730
        %v1860 = vunpack.c.l.b16 %v1731
        %v1861 = vunpack.c.l.b16 %v1732
        %v1862 = vunpack.c.l.b16 %v1733
        %v1863 = vunpack.c.l.b16 %v1734
        %v1864 = vunpack.c.l.b16 %v1735
        %v1865 = vunpack.c.l.b16 %v1736
        %v1866 = vpack.c.b16 %v1803, %v1802
        %v1867 = vpack.c.b16 %v1805, %v1804
        %v1868 = vpack.c.b16 %v1807, %v1806
        %v1869 = vpack.c.b16 %v1809, %v1808
        %v1870 = vpack.c.b16 %v1811, %v1810
        %v1871 = vpack.c.b16 %v1813, %v1812
        %v1872 = vpack.c.b16 %v1815, %v1814
        %v1873 = vpack.c.b16 %v1817, %v1816
        %v1874 = vpack.c.b16 %v1819, %v1818
        %v1875 = vpack.c.b16 %v1821, %v1820
        %v1876 = vpack.c.b16 %v1823, %v1822
        %v1877 = vpack.c.b16 %v1825, %v1824
        %v1878 = vpack.c.b16 %v1827, %v1826
        %v1879 = vpack.c.b16 %v1829, %v1828
        %v1880 = vpack.c.b16 %v1831, %v1830
        %v1881 = vpack.c.b16 %v1833, %v1832
        %v1882 = vpack.c.b16 %v1835, %v1834
        %v1883 = vpack.c.b16 %v1837, %v1836
        %v1884 = vpack.c.b16 %v1839, %v1838
        %v1885 = vpack.c.b16 %v1841, %v1840
        %v1886 = vpack.c.b16 %v1843, %v1842
        %v1887 = vpack.c.b16 %v1845, %v1844
        %v1888 = vpack.c.b16 %v1847, %v1846
        %v1889 = vpack.c.b16 %v1849, %v1848
        %v1890 = vpack.c.b16 %v1851, %v1850
        %v1891 = vpack.c.b16 %v1853, %v1852
        %v1892 = vpack.c.b16 %v1855, %v1854
        %v1893 = vpack.c.b16 %v1857, %v1856
        %v1894 = vpack.c.b16 %v1859, %v1858
        %v1895 = vpack.c.b16 %v1861, %v1860
        %v1896 = vpack.c.b16 %v1863, %v1862
        %v1897 = vpack.c.b16 %v1865, %v1864
        %1930 = vmatpush.bf16.msra.mxu0 %v1873
        %1931 = vmatpush.bf16.msra.mxu0 %v1872
        %1932 = vmatpush.bf16.msra.mxu0 %v1871
        %1933 = vmatpush.bf16.msra.mxu0 %v1870
        %1934 = vmatpush.bf16.msra.mxu0 %v1869
        %1935 = vmatpush.bf16.msra.mxu0 %v1868
        %1936 = vmatpush.bf16.msra.mxu0 %v1867
        %1937 = vmatpush.bf16.msra.mxu0 %v1866
        %1938 = vmatmul.bf16.gmra.mxu0 %v1669
        %v1939 = vpop.f32.mrf.mxu0
        %v1940 = vadd.f32 %v1737, %v1939
        %v1941 = vpop.f32.mrf.mxu0
        %v1942 = vadd.f32 %v1737, %v1941
        %1943 = vdwg.mxu0
        %1944 = vmatpush.bf16.msra.mxu0 %v1881
        %1945 = vmatpush.bf16.msra.mxu0 %v1880
        %1946 = vmatpush.bf16.msra.mxu0 %v1879
        %1947 = vmatpush.bf16.msra.mxu0 %v1878
        %1948 = vmatpush.bf16.msra.mxu0 %v1877
        %1949 = vmatpush.bf16.msra.mxu0 %v1876
        %1950 = vmatpush.bf16.msra.mxu0 %v1875
        %1951 = vmatpush.bf16.msra.mxu0 %v1874
        %1952 = vmatmul.bf16.gmra.mxu0 %v1670
        %v1953 = vpop.f32.mrf.mxu0
        %v1954 = vadd.f32 %v1940, %v1953
        %v1955 = vpop.f32.mrf.mxu0
        %v1956 = vadd.f32 %v1942, %v1955
        %1957 = vdwg.mxu0
        %1958 = vmatpush.bf16.msra.mxu0 %v1889
        %1959 = vmatpush.bf16.msra.mxu0 %v1888
        %1960 = vmatpush.bf16.msra.mxu0 %v1887
        %1961 = vmatpush.bf16.msra.mxu0 %v1886
        %1962 = vmatpush.bf16.msra.mxu0 %v1885
        %1963 = vmatpush.bf16.msra.mxu0 %v1884
        %1964 = vmatpush.bf16.msra.mxu0 %v1883
        %1965 = vmatpush.bf16.msra.mxu0 %v1882
        %1966 = vmatmul.bf16.gmra.mxu0 %v1671
        %v1967 = vpop.f32.mrf.mxu0
        %v1968 = vadd.f32 %v1954, %v1967
        %v1969 = vpop.f32.mrf.mxu0
        %v1970 = vadd.f32 %v1956, %v1969
        %1971 = vdwg.mxu0
        %1972 = vmatpush.bf16.msra.mxu0 %v1897
        %1973 = vmatpush.bf16.msra.mxu0 %v1896
        %1974 = vmatpush.bf16.msra.mxu0 %v1895
        %1975 = vmatpush.bf16.msra.mxu0 %v1894
        %1976 = vmatpush.bf16.msra.mxu0 %v1893
        %1977 = vmatpush.bf16.msra.mxu0 %v1892
        %1978 = vmatpush.bf16.msra.mxu0 %v1891
        %1979 = vmatpush.bf16.msra.mxu0 %v1890
        %1980 = vmatmul.bf16.gmra.mxu0 %v1672
        %v1981 = vpop.f32.mrf.mxu0
        %v1982 = vadd.f32 %v1968, %v1981
        %v1983 = vpop.f32.mrf.mxu0
        %v1984 = vadd.f32 %v1970, %v1983
        %1985 = vdwg.mxu0
        %v1986 = vadd.f32 %v1336, %v1982
        %v1987 = vadd.f32 %v1337, %v1984
        %1988 = vadd.xlane.f32.xlu0 %v1986
        %v1989 = vpop.xlane.xlu0 %1988
        %1990 = vadd.xlane.f32.xlu0 %v1987
        %v1991 = vpop.xlane.xlu0 %1990
        %v1992 = vmul.f32 %v1989, %v1295
        %v1993 = vmul.f32 %v1991, %v1295
        %v1994 = vsub.f32 %v1986, %v1992
        %v1995 = vsub.f32 %v1987, %v1993
        %v1996 = vmul.f32 %v1994, %v1994
        %v1997 = vmul.f32 %v1995, %v1995
        %1998 = vadd.xlane.f32.xlu0 %v1996
        %v1999 = vpop.xlane.xlu0 %1998
        %2000 = vadd.xlane.f32.xlu0 %v1997
        %v2001 = vpop.xlane.xlu0 %2000
        %v2002 = vmul.f32 %v1999, %v1295
        %v2003 = vmul.f32 %v2001, %v1295
        %v2004 = vadd.f32 %v2002, 1e-12
        %v2005 = vadd.f32 %v2003, 1e-12
        %v2006 = vrsqrt.pop %v2004
        %v2007 = vmul.f32 %v2006, %v2004
        %v2008 = vmul.f32 %v2007, %v2006
        %v2009 = vmul.f32 0.5, %v2008
        %v2010 = vsub.f32 1.5, %v2009
        %v2011 = vmul.f32 %v2006, %v2010
        %vm2012 = vweird.f32 %v2004
        %vm2013 = vweird.f32 %v2006
        %vm2014 = vmor %vm2012, %vm2013
        %v2015 = vsel %vm2014, %v2006, %v2011
        %v2016 = vrsqrt.pop %v2005
        %v2017 = vmul.f32 %v2016, %v2005
        %v2018 = vmul.f32 %v2017, %v2016
        %v2019 = vmul.f32 0.5, %v2018
        %v2020 = vsub.f32 1.5, %v2019
        %v2021 = vmul.f32 %v2016, %v2020
        %vm2022 = vweird.f32 %v2005
        %vm2023 = vweird.f32 %v2016
        %vm2024 = vmor %vm2022, %vm2023
        %v2025 = vsel %vm2024, %v2016, %v2021
        %v2026 = vmul.f32 %v1994, %v2015
        %v2027 = vmul.f32 %v1995, %v2025
        %v2028 = vperm.slane %v534, 4
        %v2029 = vmul.f32 %v2026, %v2028
        %v2030 = vmul.f32 %v2027, %v2028
        %v2031 = vperm.slane %v534, 5
        %v2032 = vadd.f32 %v2029, %v2031
        %v2033 = vadd.f32 %v2030, %v2031
        %2034 = vst [vmem:[#allocation2] sm:$0xff] %v2032
        %2035 = vst [vmem:[#allocation2 + $0x8] sm:$0xff] %v2033
        %p2036 = scmp.eq.s32.totalorder %s31, 1
        // Predicated region
        $region65: #{bert_narrative_graph_forward.1} parent=59 // pred_check
          %p2037 = pneg %p2036
        $region66: #{bert_narrative_graph_forward.1} parent=59 // pred_check_branch
          %2039 = sbr.rel (%p2037) target = $region68
        $region67: #{bert_narrative_graph_forward.1} parent=59 // pred_region
          %v2040 = vlaneseq
          %v2041 = vshrl.u32 %v2040, 7
          %v2042 = vadd.s32 %v2041, 8
          %s2043 = sld [smem:[#allocation4]]
          %v2044 = vstv %s2043
          %vm2045 = vcmp.eq.s32.totalorder %v2041, %v2044
          %vm2046 = vcmp.eq.s32.totalorder %v2042, %v2044
          %v2047 = vsel %vm2045, %v2032, 0.0
          %v2048 = vsel %vm2046, %v2033, 0.0
          %v2049 = vadd.f32 %v2047, %v2048
          %v2050 = vrot.slane %v2049, 4
          %v2051 = vadd.f32 %v2049, %v2050
          %v2052 = vrot.slane %v2051, 2
          %v2053 = vadd.f32 %v2051, %v2052
          %v2054 = vrot.slane %v2053, 1
          %v2055 = vadd.f32 %v2053, %v2054
          %s2056 = sld [smem:[#allocation4 + $0x1]]
          %s2057 = sadd.s32 %s2056, 8
          %v2058 = vstv %s2057
          %vm2059 = vcmp.eq.s32.totalorder %v2041, %v2058
          %vm2060 = vcmp.eq.s32.totalorder %v2042, %v2058
          %v2061 = vsel %vm2059, %v2032, 0.0
          %v2062 = vsel %vm2060, %v2033, 0.0
          %v2063 = vadd.f32 %v2061, %v2062
          %v2064 = vrot.slane %v2063, 4
          %v2065 = vadd.f32 %v2063, %v2064
          %v2066 = vrot.slane %v2065, 2
          %v2067 = vadd.f32 %v2065, %v2066
          %v2068 = vrot.slane %v2067, 1
          %v2069 = vadd.f32 %v2067, %v2068
          %vm2070 = vcmask 1040384
          %v2071 = vsel %vm2070, %v2055, %v2069
          %2072 = vst [vmem:[#allocation5] sm:$0x3] %v2071
        $region68: #{bert_narrative_graph_forward.1} parent=59 // pred_fallthru
          _
        // Predicated region
        $region69: #{bert_narrative_graph_forward.1} parent=59 // pred_check
          %p2073 = pneg %p289
        $region70: #{bert_narrative_graph_forward.1} parent=59 // pred_check_branch
          %2075 = sbr.rel (%p2073) target = $region72
        $region71: #{bert_narrative_graph_forward.1} parent=59 // pred_region
          %2077 = vsyncadd [#allocation6], 0
          %s2079 = sshll.u32 [#allocation5], 4
          %s2080 = int_to_ptr.vmem [resolvable:$true] %s2079
          %s2081 = sshll.u32 %s11, 4
          %s2082 = int_to_ptr.hbm [resolvable:$true] %s2081
          %2084 = dma.vmem_to_hbm [thread:$0]  %s2080, 32, %s2082, [#allocation6]
        $region72: #{bert_narrative_graph_forward.1} parent=59 // pred_fallthru
          _
        // Predicated region
        $region73: #{bert_narrative_graph_forward.1} parent=59 // pred_check
          %p2085 = pneg %p289
        $region74: #{bert_narrative_graph_forward.1} parent=59 // pred_check_branch
          %2087 = sbr.rel (%p2085) target = $region76
        $region75: #{bert_narrative_graph_forward.1} parent=59 // pred_region
          %2089 = dma.done [#allocation6], 32
        $region76: #{bert_narrative_graph_forward.1} parent=59 // pred_fallthru
          _
      $region60: #{bert_narrative_graph_forward.1} parent=5 // pred_fallthru
        _
      %p2090 = scmp.le.s32.totalorder 2, %s26
      // Predicated region
      $region77: #{bert_narrative_graph_forward.1} parent=5 // pred_check
        %p2091 = pneg %p2090
      $region78: #{bert_narrative_graph_forward.1} parent=5 // pred_check_branch
        %2093 = sbr.rel (%p2091) target = $region80
      $region79: #{bert_narrative_graph_forward.1} parent=5 // pred_region
        %s2094 = ssub.s32 %s26, 2
      $region80: #{bert_narrative_graph_forward.1} parent=5 // pred_fallthru
        _
    $region6: #{bert_narrative_graph_forward.1} parent=1 // loop_footer
      %s30 = sadd.s32 1, %s26
    $region7: #{bert_narrative_graph_forward.1} parent=1 // loop_footer_branch
      %25 = sbr.rel target = $region3
    $region8: #{bert_narrative_graph_forward.1} parent=1 // loop_exit
      _
    %2095 = vsyncpa [#allocation6], 1
    %s2096 = scalar_lea.sflag [#allocation6], 1
    %2097 = vsyncpa %s2096, 1

</llo_original>
